<compile_context>
chip_gen: v7x
topology: tpu7x:2x2x1
jax: 0.10.0
libtpu: 0.0.40
codegen_flags: <defaults>
</compile_context>

<pallas_src>
import functools

import numpy as np

import jax
import jax.numpy as jnp
from jax.experimental import pallas as pl
from jax.experimental.pallas import tpu as pltpu


# ----------------------------------------------------------------------------
# Fused kernel: dw3x3+BN+ReLU -> 1x1+BN -> 1x1+BN+ReLU -> dw3x3+BN (+residual)
# Operates on one batch element laid out as (C, H*W): channels on sublanes,
# flattened spatial on lanes.
# ----------------------------------------------------------------------------
def _fused_sim_kernel(H, W, identity, use_mxu,
                      x_ref, m_ref,
                      w1_ref, b1_ref, w2_ref, b2_ref,
                      w3_ref, b3_ref, w4_ref, b4_ref,
                      o_ref):
    """Refs:
      x_ref : (Cin, H*W)    input tile (one batch element)
      m_ref : (4, H*W)      0/1 boundary masks [h>=1, h<=H-2, w>=1, w<=W-2]
      w1_ref: (Cin, 9)      depthwise taps (BN scale folded),  b1_ref: (Cin, 1)
      w2_ref: (Mid, Cin)    1x1 weights (BN folded),           b2_ref: (Mid, 1)
      w3_ref: (Cout, Mid)   1x1 weights (BN folded),           b3_ref: (Cout, 1)
      w4_ref: (Cout, 9)     depthwise taps (BN folded),        b4_ref: (Cout, 1)
      o_ref : (Cout, H*W)
    """
    HW = H * W
    x = x_ref[...].astype(jnp.float32)                       # (Cin, HW)

    m = m_ref[...]
    vh_m, vh_p = m[0:1, :], m[1:2, :]                        # h-1 / h+1 valid
    vw_m, vw_p = m[2:3, :], m[3:4, :]                        # w-1 / w+1 valid

    # Per-tap wrap masks (None where a tap never crosses a boundary).  Computed
    # once and shared by both depthwise convs.
    tap_offsets, tap_masks = [], []
    for dh, hm in ((-1, vh_m), (0, None), (1, vh_p)):
        for dw, wm in ((-1, vw_m), (0, None), (1, vw_p)):
            if hm is None:
                msk = wm
            elif wm is None:
                msk = hm
            else:
                msk = hm * wm
            tap_offsets.append(dh * W + dw)
            tap_masks.append(msk)

    def dwconv3x3(t, w_ref_, b_ref_, relu):
        """Depthwise 3x3 (pad=1, stride=1) + folded-BN affine (+ReLU) on (C, HW)."""
        C = t.shape[0]
        wv = w_ref_[...]                                      # (C, 9)
        acc = jnp.zeros((C, HW), jnp.float32)
        for k, (off, msk) in enumerate(zip(tap_offsets, tap_masks)):
            # Shift of `off` pixels in the flattened spatial index == lane roll
            # (XLU); out-of-image / row-wrap positions are zeroed by the mask.
            tap = t if off == 0 else pltpu.roll(t, (-off) % HW, axis=1)
            if msk is not None:
                tap = tap * msk                               # (1, HW) sublane bcast
            acc = acc + tap * wv[:, k:k + 1]                  # (C, 1) lane bcast
        out = acc + b_ref_[...]
        if relu:
            out = jnp.maximum(out, 0.0)
        return out

    def mix1x1(t, w_ref_, b_ref_, relu):
        """1x1 conv + folded BN (+ReLU): (Cout_, Cin_) x (Cin_, HW) -> (Cout_, HW)."""
        co, ci = w_ref_.shape
        if use_mxu:
            # Realistic channel counts: bf16 MXU matmul, f32 accumulation.
            z = jnp.dot(w_ref_[...].astype(jnp.bfloat16),
                        t.astype(jnp.bfloat16),
                        preferred_element_type=jnp.float32)
        else:
            # Tiny channel counts: unrolled VPU broadcast-FMAs, lane-dense.
            wv = w_ref_[...]
            z = jnp.zeros((co, HW), jnp.float32)
            for c in range(ci):
                z = z + wv[:, c:c + 1] * t[c:c + 1, :]
        z = z + b_ref_[...]
        if relu:
            z = jnp.maximum(z, 0.0)
        return z

    y = dwconv3x3(x, w1_ref, b1_ref, relu=True)               # dw3x3 + BN + ReLU
    y = mix1x1(y, w2_ref, b2_ref, relu=False)                 # 1x1  + BN
    y = mix1x1(y, w3_ref, b3_ref, relu=True)                  # 1x1  + BN + ReLU
    y = dwconv3x3(y, w4_ref, b4_ref, relu=False)              # dw3x3 + BN
    if identity:
        y = y + x                                             # residual
    o_ref[...] = y.astype(o_ref.dtype)


# ----------------------------------------------------------------------------
# Wrapper
# ----------------------------------------------------------------------------
def _boundary_masks(H, W):
    """(4, H*W) float32 validity masks: [h>=1, h<=H-2, w>=1, w<=W-2]."""
    hh = np.repeat(np.arange(H), W)
    ww = np.tile(np.arange(W), H)
    m = np.stack([hh >= 1, hh <= H - 2, ww >= 1, ww <= W - 2]).astype(np.float32)
    return jnp.asarray(m)


def spatial_interaction_module(x_nchw, params, *, stride=1):
    """Forward pass. x_nchw: (N, Cin, H, W) float32. Returns (N, Cout, H, W).

    NOTE: as in the reference PyTorch module, `stride` is never applied to the
    convolutions (they are all built with stride=1); it only gates the residual.
    """
    w1p, b1p, w2p, b2p, w3p, b3p, w4p, b4p = params
    N, Cin, H, W = x_nchw.shape
    Mid = w2p.shape[0]
    Cout = w3p.shape[0]
    identity = (stride == 1) and (Cin == Cout)
    HW = H * W

    # Free, contiguous flatten (no transpose / no extra HBM pass).
    x_flat = x_nchw.reshape(N, Cin, HW)
    masks = _boundary_masks(H, W)
    use_mxu = min(Cin, Mid, Cout) >= 64   # tiny channels -> VPU FMA path

    kernel = functools.partial(_fused_sim_kernel, H, W, identity, use_mxu)

    def full2(shape):
        # Whole small array, constant block index -> DMA'd once, stays resident.
        return pl.BlockSpec(shape, lambda n: (0, 0))

    out = pl.pallas_call(
        kernel,
        out_shape=jax.ShapeDtypeStruct((N, Cout, HW), x_nchw.dtype),
        grid=(N,),
        in_specs=[
            pl.BlockSpec((None, Cin, HW), lambda n: (n, 0, 0)),   # x tile
            full2((4, HW)),                                       # boundary masks
            full2((Cin, 9)),  full2((Cin, 1)),                    # dw1 (+BN)
            full2((Mid, Cin)), full2((Mid, 1)),                   # pw1 (+BN)
            full2((Cout, Mid)), full2((Cout, 1)),                 # pw2 (+BN)
            full2((Cout, 9)), full2((Cout, 1)),                   # dw2 (+BN)
        ],
        out_specs=pl.BlockSpec((None, Cout, HW), lambda n: (n, 0, 0)),
        compiler_params=pltpu.CompilerParams(
            dimension_semantics=("parallel",),
            # default 32 MiB scoped VMEM is ample for these tiles; raise
            # vmem_limit_bytes here when enlarging tiles on v6e/v5e.
        ),
    )(x_flat, masks, w1p, b1p, w2p, b2p, w3p, b3p, w4p, b4p)

    return out.reshape(N, Cout, H, W)


# ----------------------------------------------------------------------------
# Deterministic parameter init + BN folding (kernel layouts + raw for reference)
# ----------------------------------------------------------------------------
def init_params(key, in_channel, out_channel, expansion_factor=2):
    mid = in_channel // expansion_factor
    ks = jax.random.split(key, 8)

    def bn(k, c, eps=1e-5):
        k1, k2, k3, k4 = jax.random.split(k, 4)
        gamma = 1.0 + 0.1 * jax.random.normal(k1, (c,), jnp.float32)
        beta = 0.1 * jax.random.normal(k2, (c,), jnp.float32)
        mean = 0.05 * jax.random.normal(k3, (c,), jnp.float32)
        var = 1.0 + 0.1 * jax.random.uniform(k4, (c,), jnp.float32)
        s = gamma / jnp.sqrt(var + eps)
        return s, beta - mean * s

    w1 = 0.3 * jax.random.normal(ks[0], (3, 3, in_channel), jnp.float32)    # dw taps (kh,kw,c)
    s1, b1 = bn(ks[1], in_channel)
    w2 = 0.3 * jax.random.normal(ks[2], (mid, in_channel), jnp.float32)     # 1x1 (out,in)
    s2, b2 = bn(ks[3], mid)
    w3 = 0.3 * jax.random.normal(ks[4], (out_channel, mid), jnp.float32)    # 1x1 (out,in)
    s3, b3 = bn(ks[5], out_channel)
    w4 = 0.3 * jax.random.normal(ks[6], (3, 3, out_channel), jnp.float32)   # dw taps
    s4, b4 = bn(ks[7], out_channel)

    folded = (
        (w1 * s1[None, None, :]).reshape(9, in_channel).T,  b1[:, None],    # (Cin,9), (Cin,1)
        w2 * s2[:, None],                                   b2[:, None],    # (Mid,Cin), (Mid,1)
        w3 * s3[:, None],                                   b3[:, None],    # (Cout,Mid), (Cout,1)
        (w4 * s4[None, None, :]).reshape(9, out_channel).T, b4[:, None],    # (Cout,9), (Cout,1)
    )
    raw = (w1, s1, b1, w2, s2, b2, w3, s3, b3, w4, s4, b4)
    return folded, raw


# ----------------------------------------------------------------------------
# Pure-JAX reference (for verification)
# ----------------------------------------------------------------------------
def reference(x_nchw, raw, *, stride=1):
    w1, s1, b1, w2, s2, b2, w3, s3, b3, w4, s4, b4 = raw
    N, Cin, H, W = x_nchw.shape
    Cout = w3.shape[0]
    identity = (stride == 1) and (Cin == Cout)

    x = jnp.transpose(x_nchw, (0, 2, 3, 1))                      # NHWC
    dn = ("NHWC", "HWIO", "NHWC")

    y = jax.lax.conv_general_dilated(x, w1.reshape(3, 3, 1, Cin), (1, 1), "SAME",
                                     dimension_numbers=dn, feature_group_count=Cin)
    y = jnp.maximum(y * s1 + b1, 0.0)

    y = jnp.einsum("nhwc,mc->nhwm", y, w2) * s2 + b2
    y = jnp.maximum(jnp.einsum("nhwm,om->nhwo", y, w3) * s3 + b3, 0.0)

    y = jax.lax.conv_general_dilated(y, w4.reshape(3, 3, 1, Cout), (1, 1), "SAME",
                                     dimension_numbers=dn, feature_group_count=Cout)
    y = y * s4 + b4
    if identity:
        y = y + x
    return jnp.transpose(y, (0, 3, 1, 2))                        # NCHW


# ----------------------------------------------------------------------------
if __name__ == "__main__":
    key = jax.random.PRNGKey(0)
    kx, kp = jax.random.split(key)

    N, in_channel, out_channel, H, W = 2, 8, 8, 16, 16   # stride=1, identity path active
    x = jax.random.normal(kx, (N, in_channel, H, W), jnp.float32)
    params, raw = init_params(kp, in_channel, out_channel, expansion_factor=2)

    out = spatial_interaction_module(x, params, stride=1)
    out = jax.block_until_ready(out)

    ref = reference(x, raw, stride=1)
    assert out.shape == (N, out_channel, H, W), out.shape
    err = float(jnp.max(jnp.abs(out - ref)))
    assert err < 1e-3, f"max abs error too large: {err}"

    print("KERNEL_OK")
</pallas_src>

<mosaic_0001>
module attributes {stable_mosaic.version = 11 : i64} {
  func.func @_fused_sim_kernel(%arg0: i32, %arg1: memref<1x8x256xf32, #tpu.memory_space<vmem>>, %arg2: memref<4x256xf32, #tpu.memory_space<vmem>>, %arg3: memref<8x9xf32, #tpu.memory_space<vmem>>, %arg4: memref<8x1xf32, #tpu.memory_space<vmem>>, %arg5: memref<4x8xf32, #tpu.memory_space<vmem>>, %arg6: memref<4x1xf32, #tpu.memory_space<vmem>>, %arg7: memref<8x4xf32, #tpu.memory_space<vmem>>, %arg8: memref<8x1xf32, #tpu.memory_space<vmem>>, %arg9: memref<8x9xf32, #tpu.memory_space<vmem>>, %arg10: memref<8x1xf32, #tpu.memory_space<vmem>>, %arg11: memref<1x8x256xf32, #tpu.memory_space<vmem>>) attributes {dimension_semantics = [#tpu.dimension_semantics<parallel>], iteration_bounds = array<i64: 2>, scalar_prefetch = 0 : i64, scratch_operands = 0 : i64, tpu.core_type = #tpu.core_type<tc>, window_params = [{transform_indices = @transform_0, window_bounds = array<i64: 1, 8, 256>}, {pipeline_mode = #tpu.pipeline_mode<synchronous>, transform_indices = @transform_1, window_bounds = array<i64: 4, 256>}, {pipeline_mode = #tpu.pipeline_mode<synchronous>, transform_indices = @transform_2, window_bounds = array<i64: 8, 9>}, {pipeline_mode = #tpu.pipeline_mode<synchronous>, transform_indices = @transform_3, window_bounds = array<i64: 8, 1>}, {pipeline_mode = #tpu.pipeline_mode<synchronous>, transform_indices = @transform_4, window_bounds = array<i64: 4, 8>}, {pipeline_mode = #tpu.pipeline_mode<synchronous>, transform_indices = @transform_5, window_bounds = array<i64: 4, 1>}, {pipeline_mode = #tpu.pipeline_mode<synchronous>, transform_indices = @transform_6, window_bounds = array<i64: 8, 4>}, {pipeline_mode = #tpu.pipeline_mode<synchronous>, transform_indices = @transform_7, window_bounds = array<i64: 8, 1>}, {pipeline_mode = #tpu.pipeline_mode<synchronous>, transform_indices = @transform_8, window_bounds = array<i64: 8, 9>}, {pipeline_mode = #tpu.pipeline_mode<synchronous>, transform_indices = @transform_9, window_bounds = array<i64: 8, 1>}, {transform_indices = @transform_10, window_bounds = array<i64: 1, 8, 256>}]} {
    %c0 = arith.constant 0 : index
    %c0_0 = arith.constant 0 : index
    %c0_1 = arith.constant 0 : index
    %0 = vector.load %arg1[%c0, %c0_0, %c0_1] : memref<1x8x256xf32, #tpu.memory_space<vmem>>, vector<1x8x256xf32>
    %1 = vector.shape_cast %0 : vector<1x8x256xf32> to vector<8x256xf32>
    %c0_2 = arith.constant 0 : index
    %c0_3 = arith.constant 0 : index
    %2 = vector.load %arg2[%c0_2, %c0_3] : memref<4x256xf32, #tpu.memory_space<vmem>>, vector<4x256xf32>
    %3 = vector.extract_strided_slice %2 {offsets = [0, 0], sizes = [1, 256], strides = [1, 1]} : vector<4x256xf32> to vector<1x256xf32>
    %4 = vector.extract_strided_slice %2 {offsets = [1, 0], sizes = [1, 256], strides = [1, 1]} : vector<4x256xf32> to vector<1x256xf32>
    %5 = vector.extract_strided_slice %2 {offsets = [2, 0], sizes = [1, 256], strides = [1, 1]} : vector<4x256xf32> to vector<1x256xf32>
    %6 = vector.extract_strided_slice %2 {offsets = [3, 0], sizes = [1, 256], strides = [1, 1]} : vector<4x256xf32> to vector<1x256xf32>
    %7 = arith.mulf %3, %5 : vector<1x256xf32>
    %8 = arith.mulf %3, %6 : vector<1x256xf32>
    %9 = arith.mulf %4, %5 : vector<1x256xf32>
    %10 = arith.mulf %4, %6 : vector<1x256xf32>
    %c0_4 = arith.constant 0 : index
    %c0_5 = arith.constant 0 : index
    %11 = vector.load %arg3[%c0_4, %c0_5] : memref<8x9xf32, #tpu.memory_space<vmem>>, vector<8x9xf32>
    %cst = arith.constant 0.000000e+00 : f32
    %12 = vector.broadcast %cst : f32 to vector<8x256xf32>
    %c17_i32 = arith.constant 17 : i32
    %13 = tpu.dynamic_rotate %1 by %c17_i32 dim 1 : vector<8x256xf32>, i32 -> vector<8x256xf32>
    %14 = vector.broadcast %7 : vector<1x256xf32> to vector<8x256xf32>
    %15 = arith.mulf %13, %14 : vector<8x256xf32>
    %16 = vector.extract_strided_slice %11 {offsets = [0, 0], sizes = [8, 1], strides = [1, 1]} : vector<8x9xf32> to vector<8x1xf32>
    %17 = vector.broadcast %16 : vector<8x1xf32> to vector<8x256xf32>
    %18 = arith.mulf %15, %17 : vector<8x256xf32>
    %19 = arith.addf %12, %18 : vector<8x256xf32>
    %c16_i32 = arith.constant 16 : i32
    %20 = tpu.dynamic_rotate %1 by %c16_i32 dim 1 : vector<8x256xf32>, i32 -> vector<8x256xf32>
    %21 = vector.broadcast %3 : vector<1x256xf32> to vector<8x256xf32>
    %22 = arith.mulf %20, %21 : vector<8x256xf32>
    %23 = vector.extract_strided_slice %11 {offsets = [0, 1], sizes = [8, 1], strides = [1, 1]} : vector<8x9xf32> to vector<8x1xf32>
    %24 = vector.broadcast %23 : vector<8x1xf32> to vector<8x256xf32>
    %25 = arith.mulf %22, %24 : vector<8x256xf32>
    %26 = arith.addf %19, %25 : vector<8x256xf32>
    %c15_i32 = arith.constant 15 : i32
    %27 = tpu.dynamic_rotate %1 by %c15_i32 dim 1 : vector<8x256xf32>, i32 -> vector<8x256xf32>
    %28 = vector.broadcast %8 : vector<1x256xf32> to vector<8x256xf32>
    %29 = arith.mulf %27, %28 : vector<8x256xf32>
    %30 = vector.extract_strided_slice %11 {offsets = [0, 2], sizes = [8, 1], strides = [1, 1]} : vector<8x9xf32> to vector<8x1xf32>
    %31 = vector.broadcast %30 : vector<8x1xf32> to vector<8x256xf32>
    %32 = arith.mulf %29, %31 : vector<8x256xf32>
    %33 = arith.addf %26, %32 : vector<8x256xf32>
    %c1_i32 = arith.constant 1 : i32
    %34 = tpu.dynamic_rotate %1 by %c1_i32 dim 1 : vector<8x256xf32>, i32 -> vector<8x256xf32>
    %35 = vector.broadcast %5 : vector<1x256xf32> to vector<8x256xf32>
    %36 = arith.mulf %34, %35 : vector<8x256xf32>
    %37 = vector.extract_strided_slice %11 {offsets = [0, 3], sizes = [8, 1], strides = [1, 1]} : vector<8x9xf32> to vector<8x1xf32>
    %38 = vector.broadcast %37 : vector<8x1xf32> to vector<8x256xf32>
    %39 = arith.mulf %36, %38 : vector<8x256xf32>
    %40 = arith.addf %33, %39 : vector<8x256xf32>
    %41 = vector.extract_strided_slice %11 {offsets = [0, 4], sizes = [8, 1], strides = [1, 1]} : vector<8x9xf32> to vector<8x1xf32>
    %42 = vector.broadcast %41 : vector<8x1xf32> to vector<8x256xf32>
    %43 = arith.mulf %1, %42 : vector<8x256xf32>
    %44 = arith.addf %40, %43 : vector<8x256xf32>
    %c255_i32 = arith.constant 255 : i32
    %45 = tpu.dynamic_rotate %1 by %c255_i32 dim 1 : vector<8x256xf32>, i32 -> vector<8x256xf32>
    %46 = vector.broadcast %6 : vector<1x256xf32> to vector<8x256xf32>
    %47 = arith.mulf %45, %46 : vector<8x256xf32>
    %48 = vector.extract_strided_slice %11 {offsets = [0, 5], sizes = [8, 1], strides = [1, 1]} : vector<8x9xf32> to vector<8x1xf32>
    %49 = vector.broadcast %48 : vector<8x1xf32> to vector<8x256xf32>
    %50 = arith.mulf %47, %49 : vector<8x256xf32>
    %51 = arith.addf %44, %50 : vector<8x256xf32>
    %c241_i32 = arith.constant 241 : i32
    %52 = tpu.dynamic_rotate %1 by %c241_i32 dim 1 : vector<8x256xf32>, i32 -> vector<8x256xf32>
    %53 = vector.broadcast %9 : vector<1x256xf32> to vector<8x256xf32>
    %54 = arith.mulf %52, %53 : vector<8x256xf32>
    %55 = vector.extract_strided_slice %11 {offsets = [0, 6], sizes = [8, 1], strides = [1, 1]} : vector<8x9xf32> to vector<8x1xf32>
    %56 = vector.broadcast %55 : vector<8x1xf32> to vector<8x256xf32>
    %57 = arith.mulf %54, %56 : vector<8x256xf32>
    %58 = arith.addf %51, %57 : vector<8x256xf32>
    %c240_i32 = arith.constant 240 : i32
    %59 = tpu.dynamic_rotate %1 by %c240_i32 dim 1 : vector<8x256xf32>, i32 -> vector<8x256xf32>
    %60 = vector.broadcast %4 : vector<1x256xf32> to vector<8x256xf32>
    %61 = arith.mulf %59, %60 : vector<8x256xf32>
    %62 = vector.extract_strided_slice %11 {offsets = [0, 7], sizes = [8, 1], strides = [1, 1]} : vector<8x9xf32> to vector<8x1xf32>
    %63 = vector.broadcast %62 : vector<8x1xf32> to vector<8x256xf32>
    %64 = arith.mulf %61, %63 : vector<8x256xf32>
    %65 = arith.addf %58, %64 : vector<8x256xf32>
    %c239_i32 = arith.constant 239 : i32
    %66 = tpu.dynamic_rotate %1 by %c239_i32 dim 1 : vector<8x256xf32>, i32 -> vector<8x256xf32>
    %67 = vector.broadcast %10 : vector<1x256xf32> to vector<8x256xf32>
    %68 = arith.mulf %66, %67 : vector<8x256xf32>
    %69 = vector.extract_strided_slice %11 {offsets = [0, 8], sizes = [8, 1], strides = [1, 1]} : vector<8x9xf32> to vector<8x1xf32>
    %70 = vector.broadcast %69 : vector<8x1xf32> to vector<8x256xf32>
    %71 = arith.mulf %68, %70 : vector<8x256xf32>
    %72 = arith.addf %65, %71 : vector<8x256xf32>
    %c0_6 = arith.constant 0 : index
    %c0_7 = arith.constant 0 : index
    %73 = vector.load %arg4[%c0_6, %c0_7] : memref<8x1xf32, #tpu.memory_space<vmem>>, vector<8x1xf32>
    %74 = vector.broadcast %73 : vector<8x1xf32> to vector<8x256xf32>
    %75 = arith.addf %72, %74 : vector<8x256xf32>
    %cst_8 = arith.constant 0.000000e+00 : f32
    %76 = vector.broadcast %cst_8 : f32 to vector<8x256xf32>
    %77 = arith.maximumf %75, %76 : vector<8x256xf32>
    %c0_9 = arith.constant 0 : index
    %c0_10 = arith.constant 0 : index
    %78 = vector.load %arg5[%c0_9, %c0_10] : memref<4x8xf32, #tpu.memory_space<vmem>>, vector<4x8xf32>
    %cst_11 = arith.constant 0.000000e+00 : f32
    %79 = vector.broadcast %cst_11 : f32 to vector<4x256xf32>
    %80 = vector.extract_strided_slice %78 {offsets = [0, 0], sizes = [4, 1], strides = [1, 1]} : vector<4x8xf32> to vector<4x1xf32>
    %81 = vector.extract_strided_slice %77 {offsets = [0, 0], sizes = [1, 256], strides = [1, 1]} : vector<8x256xf32> to vector<1x256xf32>
    %82 = vector.broadcast %80 : vector<4x1xf32> to vector<4x256xf32>
    %83 = vector.broadcast %81 : vector<1x256xf32> to vector<4x256xf32>
    %84 = arith.mulf %82, %83 : vector<4x256xf32>
    %85 = arith.addf %79, %84 : vector<4x256xf32>
    %86 = vector.extract_strided_slice %78 {offsets = [0, 1], sizes = [4, 1], strides = [1, 1]} : vector<4x8xf32> to vector<4x1xf32>
    %87 = vector.extract_strided_slice %77 {offsets = [1, 0], sizes = [1, 256], strides = [1, 1]} : vector<8x256xf32> to vector<1x256xf32>
    %88 = vector.broadcast %86 : vector<4x1xf32> to vector<4x256xf32>
    %89 = vector.broadcast %87 : vector<1x256xf32> to vector<4x256xf32>
    %90 = arith.mulf %88, %89 : vector<4x256xf32>
    %91 = arith.addf %85, %90 : vector<4x256xf32>
    %92 = vector.extract_strided_slice %78 {offsets = [0, 2], sizes = [4, 1], strides = [1, 1]} : vector<4x8xf32> to vector<4x1xf32>
    %93 = vector.extract_strided_slice %77 {offsets = [2, 0], sizes = [1, 256], strides = [1, 1]} : vector<8x256xf32> to vector<1x256xf32>
    %94 = vector.broadcast %92 : vector<4x1xf32> to vector<4x256xf32>
    %95 = vector.broadcast %93 : vector<1x256xf32> to vector<4x256xf32>
    %96 = arith.mulf %94, %95 : vector<4x256xf32>
    %97 = arith.addf %91, %96 : vector<4x256xf32>
    %98 = vector.extract_strided_slice %78 {offsets = [0, 3], sizes = [4, 1], strides = [1, 1]} : vector<4x8xf32> to vector<4x1xf32>
    %99 = vector.extract_strided_slice %77 {offsets = [3, 0], sizes = [1, 256], strides = [1, 1]} : vector<8x256xf32> to vector<1x256xf32>
    %100 = vector.broadcast %98 : vector<4x1xf32> to vector<4x256xf32>
    %101 = vector.broadcast %99 : vector<1x256xf32> to vector<4x256xf32>
    %102 = arith.mulf %100, %101 : vector<4x256xf32>
    %103 = arith.addf %97, %102 : vector<4x256xf32>
    %104 = vector.extract_strided_slice %78 {offsets = [0, 4], sizes = [4, 1], strides = [1, 1]} : vector<4x8xf32> to vector<4x1xf32>
    %105 = vector.extract_strided_slice %77 {offsets = [4, 0], sizes = [1, 256], strides = [1, 1]} : vector<8x256xf32> to vector<1x256xf32>
    %106 = vector.broadcast %104 : vector<4x1xf32> to vector<4x256xf32>
    %107 = vector.broadcast %105 : vector<1x256xf32> to vector<4x256xf32>
    %108 = arith.mulf %106, %107 : vector<4x256xf32>
    %109 = arith.addf %103, %108 : vector<4x256xf32>
    %110 = vector.extract_strided_slice %78 {offsets = [0, 5], sizes = [4, 1], strides = [1, 1]} : vector<4x8xf32> to vector<4x1xf32>
    %111 = vector.extract_strided_slice %77 {offsets = [5, 0], sizes = [1, 256], strides = [1, 1]} : vector<8x256xf32> to vector<1x256xf32>
    %112 = vector.broadcast %110 : vector<4x1xf32> to vector<4x256xf32>
    %113 = vector.broadcast %111 : vector<1x256xf32> to vector<4x256xf32>
    %114 = arith.mulf %112, %113 : vector<4x256xf32>
    %115 = arith.addf %109, %114 : vector<4x256xf32>
    %116 = vector.extract_strided_slice %78 {offsets = [0, 6], sizes = [4, 1], strides = [1, 1]} : vector<4x8xf32> to vector<4x1xf32>
    %117 = vector.extract_strided_slice %77 {offsets = [6, 0], sizes = [1, 256], strides = [1, 1]} : vector<8x256xf32> to vector<1x256xf32>
    %118 = vector.broadcast %116 : vector<4x1xf32> to vector<4x256xf32>
    %119 = vector.broadcast %117 : vector<1x256xf32> to vector<4x256xf32>
    %120 = arith.mulf %118, %119 : vector<4x256xf32>
    %121 = arith.addf %115, %120 : vector<4x256xf32>
    %122 = vector.extract_strided_slice %78 {offsets = [0, 7], sizes = [4, 1], strides = [1, 1]} : vector<4x8xf32> to vector<4x1xf32>
    %123 = vector.extract_strided_slice %77 {offsets = [7, 0], sizes = [1, 256], strides = [1, 1]} : vector<8x256xf32> to vector<1x256xf32>
    %124 = vector.broadcast %122 : vector<4x1xf32> to vector<4x256xf32>
    %125 = vector.broadcast %123 : vector<1x256xf32> to vector<4x256xf32>
    %126 = arith.mulf %124, %125 : vector<4x256xf32>
    %127 = arith.addf %121, %126 : vector<4x256xf32>
    %c0_12 = arith.constant 0 : index
    %c0_13 = arith.constant 0 : index
    %128 = vector.load %arg6[%c0_12, %c0_13] : memref<4x1xf32, #tpu.memory_space<vmem>>, vector<4x1xf32>
    %129 = vector.broadcast %128 : vector<4x1xf32> to vector<4x256xf32>
    %130 = arith.addf %127, %129 : vector<4x256xf32>
    %c0_14 = arith.constant 0 : index
    %c0_15 = arith.constant 0 : index
    %131 = vector.load %arg7[%c0_14, %c0_15] : memref<8x4xf32, #tpu.memory_space<vmem>>, vector<8x4xf32>
    %cst_16 = arith.constant 0.000000e+00 : f32
    %132 = vector.broadcast %cst_16 : f32 to vector<8x256xf32>
    %133 = vector.extract_strided_slice %131 {offsets = [0, 0], sizes = [8, 1], strides = [1, 1]} : vector<8x4xf32> to vector<8x1xf32>
    %134 = vector.extract_strided_slice %130 {offsets = [0, 0], sizes = [1, 256], strides = [1, 1]} : vector<4x256xf32> to vector<1x256xf32>
    %135 = vector.broadcast %133 : vector<8x1xf32> to vector<8x256xf32>
    %136 = vector.broadcast %134 : vector<1x256xf32> to vector<8x256xf32>
    %137 = arith.mulf %135, %136 : vector<8x256xf32>
    %138 = arith.addf %132, %137 : vector<8x256xf32>
    %139 = vector.extract_strided_slice %131 {offsets = [0, 1], sizes = [8, 1], strides = [1, 1]} : vector<8x4xf32> to vector<8x1xf32>
    %140 = vector.extract_strided_slice %130 {offsets = [1, 0], sizes = [1, 256], strides = [1, 1]} : vector<4x256xf32> to vector<1x256xf32>
    %141 = vector.broadcast %139 : vector<8x1xf32> to vector<8x256xf32>
    %142 = vector.broadcast %140 : vector<1x256xf32> to vector<8x256xf32>
    %143 = arith.mulf %141, %142 : vector<8x256xf32>
    %144 = arith.addf %138, %143 : vector<8x256xf32>
    %145 = vector.extract_strided_slice %131 {offsets = [0, 2], sizes = [8, 1], strides = [1, 1]} : vector<8x4xf32> to vector<8x1xf32>
    %146 = vector.extract_strided_slice %130 {offsets = [2, 0], sizes = [1, 256], strides = [1, 1]} : vector<4x256xf32> to vector<1x256xf32>
    %147 = vector.broadcast %145 : vector<8x1xf32> to vector<8x256xf32>
    %148 = vector.broadcast %146 : vector<1x256xf32> to vector<8x256xf32>
    %149 = arith.mulf %147, %148 : vector<8x256xf32>
    %150 = arith.addf %144, %149 : vector<8x256xf32>
    %151 = vector.extract_strided_slice %131 {offsets = [0, 3], sizes = [8, 1], strides = [1, 1]} : vector<8x4xf32> to vector<8x1xf32>
    %152 = vector.extract_strided_slice %130 {offsets = [3, 0], sizes = [1, 256], strides = [1, 1]} : vector<4x256xf32> to vector<1x256xf32>
    %153 = vector.broadcast %151 : vector<8x1xf32> to vector<8x256xf32>
    %154 = vector.broadcast %152 : vector<1x256xf32> to vector<8x256xf32>
    %155 = arith.mulf %153, %154 : vector<8x256xf32>
    %156 = arith.addf %150, %155 : vector<8x256xf32>
    %c0_17 = arith.constant 0 : index
    %c0_18 = arith.constant 0 : index
    %157 = vector.load %arg8[%c0_17, %c0_18] : memref<8x1xf32, #tpu.memory_space<vmem>>, vector<8x1xf32>
    %158 = vector.broadcast %157 : vector<8x1xf32> to vector<8x256xf32>
    %159 = arith.addf %156, %158 : vector<8x256xf32>
    %cst_19 = arith.constant 0.000000e+00 : f32
    %160 = vector.broadcast %cst_19 : f32 to vector<8x256xf32>
    %161 = arith.maximumf %159, %160 : vector<8x256xf32>
    %c0_20 = arith.constant 0 : index
    %c0_21 = arith.constant 0 : index
    %162 = vector.load %arg9[%c0_20, %c0_21] : memref<8x9xf32, #tpu.memory_space<vmem>>, vector<8x9xf32>
    %cst_22 = arith.constant 0.000000e+00 : f32
    %163 = vector.broadcast %cst_22 : f32 to vector<8x256xf32>
    %c17_i32_23 = arith.constant 17 : i32
    %164 = tpu.dynamic_rotate %161 by %c17_i32_23 dim 1 : vector<8x256xf32>, i32 -> vector<8x256xf32>
    %165 = vector.broadcast %7 : vector<1x256xf32> to vector<8x256xf32>
    %166 = arith.mulf %164, %165 : vector<8x256xf32>
    %167 = vector.extract_strided_slice %162 {offsets = [0, 0], sizes = [8, 1], strides = [1, 1]} : vector<8x9xf32> to vector<8x1xf32>
    %168 = vector.broadcast %167 : vector<8x1xf32> to vector<8x256xf32>
    %169 = arith.mulf %166, %168 : vector<8x256xf32>
    %170 = arith.addf %163, %169 : vector<8x256xf32>
    %c16_i32_24 = arith.constant 16 : i32
    %171 = tpu.dynamic_rotate %161 by %c16_i32_24 dim 1 : vector<8x256xf32>, i32 -> vector<8x256xf32>
    %172 = vector.broadcast %3 : vector<1x256xf32> to vector<8x256xf32>
    %173 = arith.mulf %171, %172 : vector<8x256xf32>
    %174 = vector.extract_strided_slice %162 {offsets = [0, 1], sizes = [8, 1], strides = [1, 1]} : vector<8x9xf32> to vector<8x1xf32>
    %175 = vector.broadcast %174 : vector<8x1xf32> to vector<8x256xf32>
    %176 = arith.mulf %173, %175 : vector<8x256xf32>
    %177 = arith.addf %170, %176 : vector<8x256xf32>
    %c15_i32_25 = arith.constant 15 : i32
    %178 = tpu.dynamic_rotate %161 by %c15_i32_25 dim 1 : vector<8x256xf32>, i32 -> vector<8x256xf32>
    %179 = vector.broadcast %8 : vector<1x256xf32> to vector<8x256xf32>
    %180 = arith.mulf %178, %179 : vector<8x256xf32>
    %181 = vector.extract_strided_slice %162 {offsets = [0, 2], sizes = [8, 1], strides = [1, 1]} : vector<8x9xf32> to vector<8x1xf32>
    %182 = vector.broadcast %181 : vector<8x1xf32> to vector<8x256xf32>
    %183 = arith.mulf %180, %182 : vector<8x256xf32>
    %184 = arith.addf %177, %183 : vector<8x256xf32>
    %c1_i32_26 = arith.constant 1 : i32
    %185 = tpu.dynamic_rotate %161 by %c1_i32_26 dim 1 : vector<8x256xf32>, i32 -> vector<8x256xf32>
    %186 = vector.broadcast %5 : vector<1x256xf32> to vector<8x256xf32>
    %187 = arith.mulf %185, %186 : vector<8x256xf32>
    %188 = vector.extract_strided_slice %162 {offsets = [0, 3], sizes = [8, 1], strides = [1, 1]} : vector<8x9xf32> to vector<8x1xf32>
    %189 = vector.broadcast %188 : vector<8x1xf32> to vector<8x256xf32>
    %190 = arith.mulf %187, %189 : vector<8x256xf32>
    %191 = arith.addf %184, %190 : vector<8x256xf32>
    %192 = vector.extract_strided_slice %162 {offsets = [0, 4], sizes = [8, 1], strides = [1, 1]} : vector<8x9xf32> to vector<8x1xf32>
    %193 = vector.broadcast %192 : vector<8x1xf32> to vector<8x256xf32>
    %194 = arith.mulf %161, %193 : vector<8x256xf32>
    %195 = arith.addf %191, %194 : vector<8x256xf32>
    %c255_i32_27 = arith.constant 255 : i32
    %196 = tpu.dynamic_rotate %161 by %c255_i32_27 dim 1 : vector<8x256xf32>, i32 -> vector<8x256xf32>
    %197 = vector.broadcast %6 : vector<1x256xf32> to vector<8x256xf32>
    %198 = arith.mulf %196, %197 : vector<8x256xf32>
    %199 = vector.extract_strided_slice %162 {offsets = [0, 5], sizes = [8, 1], strides = [1, 1]} : vector<8x9xf32> to vector<8x1xf32>
    %200 = vector.broadcast %199 : vector<8x1xf32> to vector<8x256xf32>
    %201 = arith.mulf %198, %200 : vector<8x256xf32>
    %202 = arith.addf %195, %201 : vector<8x256xf32>
    %c241_i32_28 = arith.constant 241 : i32
    %203 = tpu.dynamic_rotate %161 by %c241_i32_28 dim 1 : vector<8x256xf32>, i32 -> vector<8x256xf32>
    %204 = vector.broadcast %9 : vector<1x256xf32> to vector<8x256xf32>
    %205 = arith.mulf %203, %204 : vector<8x256xf32>
    %206 = vector.extract_strided_slice %162 {offsets = [0, 6], sizes = [8, 1], strides = [1, 1]} : vector<8x9xf32> to vector<8x1xf32>
    %207 = vector.broadcast %206 : vector<8x1xf32> to vector<8x256xf32>
    %208 = arith.mulf %205, %207 : vector<8x256xf32>
    %209 = arith.addf %202, %208 : vector<8x256xf32>
    %c240_i32_29 = arith.constant 240 : i32
    %210 = tpu.dynamic_rotate %161 by %c240_i32_29 dim 1 : vector<8x256xf32>, i32 -> vector<8x256xf32>
    %211 = vector.broadcast %4 : vector<1x256xf32> to vector<8x256xf32>
    %212 = arith.mulf %210, %211 : vector<8x256xf32>
    %213 = vector.extract_strided_slice %162 {offsets = [0, 7], sizes = [8, 1], strides = [1, 1]} : vector<8x9xf32> to vector<8x1xf32>
    %214 = vector.broadcast %213 : vector<8x1xf32> to vector<8x256xf32>
    %215 = arith.mulf %212, %214 : vector<8x256xf32>
    %216 = arith.addf %209, %215 : vector<8x256xf32>
    %c239_i32_30 = arith.constant 239 : i32
    %217 = tpu.dynamic_rotate %161 by %c239_i32_30 dim 1 : vector<8x256xf32>, i32 -> vector<8x256xf32>
    %218 = vector.broadcast %10 : vector<1x256xf32> to vector<8x256xf32>
    %219 = arith.mulf %217, %218 : vector<8x256xf32>
    %220 = vector.extract_strided_slice %162 {offsets = [0, 8], sizes = [8, 1], strides = [1, 1]} : vector<8x9xf32> to vector<8x1xf32>
    %221 = vector.broadcast %220 : vector<8x1xf32> to vector<8x256xf32>
    %222 = arith.mulf %219, %221 : vector<8x256xf32>
    %223 = arith.addf %216, %222 : vector<8x256xf32>
    %c0_31 = arith.constant 0 : index
    %c0_32 = arith.constant 0 : index
    %224 = vector.load %arg10[%c0_31, %c0_32] : memref<8x1xf32, #tpu.memory_space<vmem>>, vector<8x1xf32>
    %225 = vector.broadcast %224 : vector<8x1xf32> to vector<8x256xf32>
    %226 = arith.addf %223, %225 : vector<8x256xf32>
    %227 = arith.addf %226, %1 : vector<8x256xf32>
    %c0_33 = arith.constant 0 : index
    %c0_34 = arith.constant 0 : index
    %c0_35 = arith.constant 0 : index
    %228 = vector.load %arg11[%c0_33, %c0_34, %c0_35] : memref<1x8x256xf32, #tpu.memory_space<vmem>>, vector<1x8x256xf32>
    %229 = vector.shape_cast %228 : vector<1x8x256xf32> to vector<8x256xf32>
    %230 = vector.shape_cast %227 : vector<8x256xf32> to vector<1x8x256xf32>
    tpu.vector_store %arg11[%c0_33, %c0_34, %c0_35], %230 {strides = array<i32>} : memref<1x8x256xf32, #tpu.memory_space<vmem>>, vector<1x8x256xf32>,
    return
  }
  func.func @transform_0(%arg0: i32) -> (i32, i32, i32) {
    %c0_i32 = arith.constant 0 : i32
    %c0_i32_0 = arith.constant 0 : i32
    %c0_i32_1 = arith.constant 0 : i32
    return %arg0, %c0_i32, %c0_i32_0 : i32, i32, i32
  }
  func.func @transform_1(%arg0: i32) -> (i32, i32) {
    %c0_i32 = arith.constant 0 : i32
    %c0_i32_0 = arith.constant 0 : i32
    %c0_i32_1 = arith.constant 0 : i32
    return %c0_i32, %c0_i32_0 : i32, i32
  }
  func.func @transform_2(%arg0: i32) -> (i32, i32) {
    %c0_i32 = arith.constant 0 : i32
    %c0_i32_0 = arith.constant 0 : i32
    %c0_i32_1 = arith.constant 0 : i32
    return %c0_i32, %c0_i32_0 : i32, i32
  }
  func.func @transform_3(%arg0: i32) -> (i32, i32) {
    %c0_i32 = arith.constant 0 : i32
    %c0_i32_0 = arith.constant 0 : i32
    %c0_i32_1 = arith.constant 0 : i32
    return %c0_i32, %c0_i32_0 : i32, i32
  }
  func.func @transform_4(%arg0: i32) -> (i32, i32) {
    %c0_i32 = arith.constant 0 : i32
    %c0_i32_0 = arith.constant 0 : i32
    %c0_i32_1 = arith.constant 0 : i32
    return %c0_i32, %c0_i32_0 : i32, i32
  }
  func.func @transform_5(%arg0: i32) -> (i32, i32) {
    %c0_i32 = arith.constant 0 : i32
    %c0_i32_0 = arith.constant 0 : i32
    %c0_i32_1 = arith.constant 0 : i32
    return %c0_i32, %c0_i32_0 : i32, i32
  }
  func.func @transform_6(%arg0: i32) -> (i32, i32) {
    %c0_i32 = arith.constant 0 : i32
    %c0_i32_0 = arith.constant 0 : i32
    %c0_i32_1 = arith.constant 0 : i32
    return %c0_i32, %c0_i32_0 : i32, i32
  }
  func.func @transform_7(%arg0: i32) -> (i32, i32) {
    %c0_i32 = arith.constant 0 : i32
    %c0_i32_0 = arith.constant 0 : i32
    %c0_i32_1 = arith.constant 0 : i32
    return %c0_i32, %c0_i32_0 : i32, i32
  }
  func.func @transform_8(%arg0: i32) -> (i32, i32) {
    %c0_i32 = arith.constant 0 : i32
    %c0_i32_0 = arith.constant 0 : i32
    %c0_i32_1 = arith.constant 0 : i32
    return %c0_i32, %c0_i32_0 : i32, i32
  }
  func.func @transform_9(%arg0: i32) -> (i32, i32) {
    %c0_i32 = arith.constant 0 : i32
    %c0_i32_0 = arith.constant 0 : i32
    %c0_i32_1 = arith.constant 0 : i32
    return %c0_i32, %c0_i32_0 : i32, i32
  }
  func.func @transform_10(%arg0: i32) -> (i32, i32, i32) {
    %c0_i32 = arith.constant 0 : i32
    %c0_i32_0 = arith.constant 0 : i32
    %c0_i32_1 = arith.constant 0 : i32
    return %arg0, %c0_i32, %c0_i32_0 : i32, i32, i32
  }
}

</mosaic_0001>

<llo_original>
// kernel: tpu_custom_call.1
$region0: #{tpu_custom_call.1}
  #allocation0 [shape = 'u32[]', space=smem, size = 0x4, offset = 0x4, fixed_abs, tag = 'smem constant byte address 0x4 - core index']
  #allocation1 [shape = 'u32[144,128]{1,0:T(1,128)}', space=vmem, size = 0x12000, scoped, tag = 'internal scratch']
  %s0 = inlined_call_operand.vmem [shape: f32[2,8,256], index: 0, kind: input, shape index: {}]
  %s1 = inlined_call_operand.vmem [shape: f32[4,256], index: 1, kind: input, shape index: {}]
  %s2 = inlined_call_operand.vmem [shape: f32[8,9], index: 2, kind: input, shape index: {}]
  %s3 = inlined_call_operand.vmem [shape: f32[8,1], index: 3, kind: input, shape index: {}]
  %s4 = inlined_call_operand.hbm [shape: f32[4,8], index: 4, kind: input, shape index: {}]
  %s5 = inlined_call_operand.vmem [shape: f32[4,1], index: 5, kind: input, shape index: {}]
  %s6 = inlined_call_operand.vmem [shape: f32[8,4], index: 6, kind: input, shape index: {}]
  %s7 = inlined_call_operand.vmem [shape: f32[8,1], index: 7, kind: input, shape index: {}]
  %s8 = inlined_call_operand.vmem [shape: f32[8,9], index: 8, kind: input, shape index: {}]
  %s9 = inlined_call_operand.vmem [shape: f32[8,1], index: 9, kind: input, shape index: {}]
  %s10 = inlined_call_operand.hbm [shape: f32[2,8,256], index: 10, kind: output, shape index: {}]
  %s11 = sld [smem:[#allocation0]]
  $region77: #{tpu_custom_call.1} parent=0
    _
  %s13 = ssub.s32 1, %s11
  %s14 = scalar_select 0, %s13, %s11
  $region1: #{tpu_custom_call.1} parent=0
    #allocation2 [shape = 'u8[2048]{0}', space=vmem, size = 0x800, scoped, tag = 'input window, operand 4, single buffered']
    #allocation3 [shape = 's32[2]{0}', space=sflag, size = 0x8, scoped, tag = 'scoped memory for tpu_custom_call.1']
    #allocation4 [shape = 's32[2]{0}', space=sflag, size = 0x8, scoped, tag = 'scoped memory for tpu_custom_call.1']
    #allocation5 [shape = 'u8[16384]{0}', space=vmem, size = 0x4000, scoped, tag = 'output window, operand 0']
    %15 = vsyncpa [#allocation3], 0
    %16 = vsyncpa [#allocation4], 0
    %s17 = scalar_lea.sflag [#allocation4], 1
    %18 = vsyncpa %s17, 0
    loop: start=0, step=1, limit=4
    $region2: #{tpu_custom_call.1} parent=1 // loop_pre_header
      _
    $region3: #{tpu_custom_call.1} parent=1 // loop_header
      %s20 = sphi 0, %s24
      %p21 = scmp.ge.s32.totalorder %s20, 4
      %s30 = sphi 0, %s32
      %s33 = sphi 0, %s30
      %s34 = sphi 0, %s33
      %s50 = sphi 0, %s34
      %s54 = sphi 0, %s54
      %s56 = sphi 0, %s54
      %s57 = sphi 0, %s56
      %s71 = sphi 0, %s57
      %s75 = sphi 0, %s75
      %s77 = sphi 0, %s75
      %s78 = sphi 0, %s77
      %s92 = sphi 0, %s78
      %s96 = sphi 0, %s96
      %s98 = sphi 0, %s96
      %s99 = sphi 0, %s98
      %s113 = sphi 0, %s99
      %s117 = sphi 0, %s117
      %s119 = sphi 0, %s117
      %s120 = sphi 0, %s119
      %s134 = sphi 0, %s120
      %s138 = sphi 0, %s138
      %s140 = sphi 0, %s138
      %s141 = sphi 0, %s140
      %s155 = sphi 0, %s141
      %s159 = sphi 0, %s159
      %s161 = sphi 0, %s159
      %s162 = sphi 0, %s161
      %s176 = sphi 0, %s162
      %s180 = sphi 0, %s180
      %s182 = sphi 0, %s180
      %s183 = sphi 0, %s182
      %s197 = sphi 0, %s183
      %s201 = sphi 0, %s201
      %s203 = sphi 0, %s201
      %s204 = sphi 0, %s203
      %s218 = sphi 0, %s204
      %s222 = sphi 0, %s222
      %s224 = sphi 0, %s222
      %s225 = sphi 0, %s224
      %s239 = sphi 0, %s225
      %s245 = sphi 0, %s247
      %s248 = sphi 0, %s245
      %s249 = sphi 0, %s248
      %s265 = sphi 0, %s249
    $region4: #{tpu_custom_call.1} parent=1 // loop_header_branch
      %23 = sbr.rel (%p21) target = $region8
    $region5: #{tpu_custom_call.1} parent=1 // loop_body
      %s25 = ssub.s32 %s20, 1
      %s26 = ssub.s32 %s20, 2
      %s27 = sadd.s32 %s20, 1
      %s28 = ssub.s32 %s20, %s27
      %p29 = scmp.eq.s32.totalorder %s28, 0
      %s31 = sadd.s32 %s30, 1
      %s32 = scalar_select %p29, %s30, %s31
      %p35 = pneg %p29
      %p36 = scmp.eq.s32.totalorder %s20, 1
      %p37 = por %p35, %p36
      %p38 = scmp.ne.s32.totalorder %s30, %s33
      %p39 = scmp.eq.s32.totalorder %s20, 0
      %p40 = por %p38, %p39
      %p41 = scmp.ne.s32.totalorder %s30, %s33
      %p42 = scmp.eq.s32.totalorder %s25, 1
      %p43 = por %p41, %p42
      %p44 = scmp.ne.s32.totalorder %s33, %s34
      %p45 = scmp.eq.s32.totalorder %s25, 0
      %p46 = por %p44, %p45
      %p47 = scmp.ne.s32.totalorder %s33, %s34
      %p48 = scmp.eq.s32.totalorder %s26, 1
      %p49 = por %p47, %p48
      %p51 = scmp.ne.s32.totalorder %s34, %s50
      %p52 = scmp.eq.s32.totalorder %s26, 0
      %p53 = por %p51, %p52
      %s55 = sadd.s32 %s54, 1
      %p58 = scmp.eq.s32.totalorder %s20, 1
      %p59 = scmp.ne.s32.totalorder %s54, %s56
      %p60 = scmp.eq.s32.totalorder %s20, 0
      %p61 = por %p59, %p60
      %p62 = scmp.ne.s32.totalorder %s54, %s56
      %p63 = scmp.eq.s32.totalorder %s25, 1
      %p64 = por %p62, %p63
      %p65 = scmp.ne.s32.totalorder %s56, %s57
      %p66 = scmp.eq.s32.totalorder %s25, 0
      %p67 = por %p65, %p66
      %p68 = scmp.ne.s32.totalorder %s56, %s57
      %p69 = scmp.eq.s32.totalorder %s26, 1
      %p70 = por %p68, %p69
      %p72 = scmp.ne.s32.totalorder %s57, %s71
      %p73 = scmp.eq.s32.totalorder %s26, 0
      %p74 = por %p72, %p73
      %s76 = sadd.s32 %s75, 1
      %p79 = scmp.eq.s32.totalorder %s20, 1
      %p80 = scmp.ne.s32.totalorder %s75, %s77
      %p81 = scmp.eq.s32.totalorder %s20, 0
      %p82 = por %p80, %p81
      %p83 = scmp.ne.s32.totalorder %s75, %s77
      %p84 = scmp.eq.s32.totalorder %s25, 1
      %p85 = por %p83, %p84
      %p86 = scmp.ne.s32.totalorder %s77, %s78
      %p87 = scmp.eq.s32.totalorder %s25, 0
      %p88 = por %p86, %p87
      %p89 = scmp.ne.s32.totalorder %s77, %s78
      %p90 = scmp.eq.s32.totalorder %s26, 1
      %p91 = por %p89, %p90
      %p93 = scmp.ne.s32.totalorder %s78, %s92
      %p94 = scmp.eq.s32.totalorder %s26, 0
      %p95 = por %p93, %p94
      %s97 = sadd.s32 %s96, 1
      %p100 = scmp.eq.s32.totalorder %s20, 1
      %p101 = scmp.ne.s32.totalorder %s96, %s98
      %p102 = scmp.eq.s32.totalorder %s20, 0
      %p103 = por %p101, %p102
      %p104 = scmp.ne.s32.totalorder %s96, %s98
      %p105 = scmp.eq.s32.totalorder %s25, 1
      %p106 = por %p104, %p105
      %p107 = scmp.ne.s32.totalorder %s98, %s99
      %p108 = scmp.eq.s32.totalorder %s25, 0
      %p109 = por %p107, %p108
      %p110 = scmp.ne.s32.totalorder %s98, %s99
      %p111 = scmp.eq.s32.totalorder %s26, 1
      %p112 = por %p110, %p111
      %p114 = scmp.ne.s32.totalorder %s99, %s113
      %p115 = scmp.eq.s32.totalorder %s26, 0
      %p116 = por %p114, %p115
      %s118 = sadd.s32 %s117, 1
      %p121 = scmp.eq.s32.totalorder %s20, 1
      %p122 = scmp.ne.s32.totalorder %s117, %s119
      %p123 = scmp.eq.s32.totalorder %s20, 0
      %p124 = por %p122, %p123
      %p125 = scmp.ne.s32.totalorder %s117, %s119
      %p126 = scmp.eq.s32.totalorder %s25, 1
      %p127 = por %p125, %p126
      %p128 = scmp.ne.s32.totalorder %s119, %s120
      %p129 = scmp.eq.s32.totalorder %s25, 0
      %p130 = por %p128, %p129
      %p131 = scmp.ne.s32.totalorder %s119, %s120
      %p132 = scmp.eq.s32.totalorder %s26, 1
      %p133 = por %p131, %p132
      %p135 = scmp.ne.s32.totalorder %s120, %s134
      %p136 = scmp.eq.s32.totalorder %s26, 0
      %p137 = por %p135, %p136
      %s139 = sadd.s32 %s138, 1
      %p142 = scmp.eq.s32.totalorder %s20, 1
      %p143 = scmp.ne.s32.totalorder %s138, %s140
      %p144 = scmp.eq.s32.totalorder %s20, 0
      %p145 = por %p143, %p144
      %p146 = scmp.ne.s32.totalorder %s138, %s140
      %p147 = scmp.eq.s32.totalorder %s25, 1
      %p148 = por %p146, %p147
      %p149 = scmp.ne.s32.totalorder %s140, %s141
      %p150 = scmp.eq.s32.totalorder %s25, 0
      %p151 = por %p149, %p150
      %p152 = scmp.ne.s32.totalorder %s140, %s141
      %p153 = scmp.eq.s32.totalorder %s26, 1
      %p154 = por %p152, %p153
      %p156 = scmp.ne.s32.totalorder %s141, %s155
      %p157 = scmp.eq.s32.totalorder %s26, 0
      %p158 = por %p156, %p157
      %s160 = sadd.s32 %s159, 1
      %p163 = scmp.eq.s32.totalorder %s20, 1
      %p164 = scmp.ne.s32.totalorder %s159, %s161
      %p165 = scmp.eq.s32.totalorder %s20, 0
      %p166 = por %p164, %p165
      %p167 = scmp.ne.s32.totalorder %s159, %s161
      %p168 = scmp.eq.s32.totalorder %s25, 1
      %p169 = por %p167, %p168
      %p170 = scmp.ne.s32.totalorder %s161, %s162
      %p171 = scmp.eq.s32.totalorder %s25, 0
      %p172 = por %p170, %p171
      %p173 = scmp.ne.s32.totalorder %s161, %s162
      %p174 = scmp.eq.s32.totalorder %s26, 1
      %p175 = por %p173, %p174
      %p177 = scmp.ne.s32.totalorder %s162, %s176
      %p178 = scmp.eq.s32.totalorder %s26, 0
      %p179 = por %p177, %p178
      %s181 = sadd.s32 %s180, 1
      %p184 = scmp.eq.s32.totalorder %s20, 1
      %p185 = scmp.ne.s32.totalorder %s180, %s182
      %p186 = scmp.eq.s32.totalorder %s20, 0
      %p187 = por %p185, %p186
      %p188 = scmp.ne.s32.totalorder %s180, %s182
      %p189 = scmp.eq.s32.totalorder %s25, 1
      %p190 = por %p188, %p189
      %p191 = scmp.ne.s32.totalorder %s182, %s183
      %p192 = scmp.eq.s32.totalorder %s25, 0
      %p193 = por %p191, %p192
      %p194 = scmp.ne.s32.totalorder %s182, %s183
      %p195 = scmp.eq.s32.totalorder %s26, 1
      %p196 = por %p194, %p195
      %p198 = scmp.ne.s32.totalorder %s183, %s197
      %p199 = scmp.eq.s32.totalorder %s26, 0
      %p200 = por %p198, %p199
      %s202 = sadd.s32 %s201, 1
      %p205 = scmp.eq.s32.totalorder %s20, 1
      %p206 = scmp.ne.s32.totalorder %s201, %s203
      %p207 = scmp.eq.s32.totalorder %s20, 0
      %p208 = por %p206, %p207
      %p209 = scmp.ne.s32.totalorder %s201, %s203
      %p210 = scmp.eq.s32.totalorder %s25, 1
      %p211 = por %p209, %p210
      %p212 = scmp.ne.s32.totalorder %s203, %s204
      %p213 = scmp.eq.s32.totalorder %s25, 0
      %p214 = por %p212, %p213
      %p215 = scmp.ne.s32.totalorder %s203, %s204
      %p216 = scmp.eq.s32.totalorder %s26, 1
      %p217 = por %p215, %p216
      %p219 = scmp.ne.s32.totalorder %s204, %s218
      %p220 = scmp.eq.s32.totalorder %s26, 0
      %p221 = por %p219, %p220
      %s223 = sadd.s32 %s222, 1
      %p226 = scmp.eq.s32.totalorder %s20, 1
      %p227 = scmp.ne.s32.totalorder %s222, %s224
      %p228 = scmp.eq.s32.totalorder %s20, 0
      %p229 = por %p227, %p228
      %p230 = scmp.ne.s32.totalorder %s222, %s224
      %p231 = scmp.eq.s32.totalorder %s25, 1
      %p232 = por %p230, %p231
      %p233 = scmp.ne.s32.totalorder %s224, %s225
      %p234 = scmp.eq.s32.totalorder %s25, 0
      %p235 = por %p233, %p234
      %p236 = scmp.ne.s32.totalorder %s224, %s225
      %p237 = scmp.eq.s32.totalorder %s26, 1
      %p238 = por %p236, %p237
      %p240 = scmp.ne.s32.totalorder %s225, %s239
      %p241 = scmp.eq.s32.totalorder %s26, 0
      %p242 = por %p240, %p241
      %s243 = ssub.s32 %s20, %s27
      %p244 = scmp.eq.s32.totalorder %s243, 0
      %s246 = sadd.s32 %s245, 1
      %s247 = scalar_select %p244, %s245, %s246
      %p250 = pneg %p244
      %p251 = scmp.eq.s32.totalorder %s20, 1
      %p252 = por %p250, %p251
      %p253 = scmp.ne.s32.totalorder %s245, %s248
      %p254 = scmp.eq.s32.totalorder %s20, 0
      %p255 = por %p253, %p254
      %p256 = scmp.ne.s32.totalorder %s245, %s248
      %p257 = scmp.eq.s32.totalorder %s25, 1
      %p258 = por %p256, %p257
      %p259 = scmp.ne.s32.totalorder %s248, %s249
      %p260 = scmp.eq.s32.totalorder %s25, 0
      %p261 = por %p259, %p260
      %p262 = scmp.ne.s32.totalorder %s248, %s249
      %p263 = scmp.eq.s32.totalorder %s26, 1
      %p264 = por %p262, %p263
      %p266 = scmp.ne.s32.totalorder %s249, %s265
      %p267 = scmp.eq.s32.totalorder %s26, 0
      %p268 = por %p266, %p267
      %p269 = scmp.le.s32.totalorder 1, %s20
      %p270 = scmp.lt.s32.totalorder %s20, 3
      %p271 = pnand %p269, %p270
      %p272 = pneg %p271
      // Predicated region
      $region9: #{tpu_custom_call.1} parent=5 // pred_check
        _
      $region10: #{tpu_custom_call.1} parent=5 // pred_check_branch
        %274 = sbr.rel (%p271) target = $region12
      $region11: #{tpu_custom_call.1} parent=5 // pred_region
        %s275 = ssub.s32 %s20, 1
        // Predicated region
        $region13: #{tpu_custom_call.1} parent=11 // pred_check
          %p276 = pneg %p67
        $region14: #{tpu_custom_call.1} parent=11 // pred_check_branch
          %278 = sbr.rel (%p276) target = $region16
        $region15: #{tpu_custom_call.1} parent=11 // pred_region
          _
        $region16: #{tpu_custom_call.1} parent=11 // pred_fallthru
          _
        // Predicated region
        $region17: #{tpu_custom_call.1} parent=11 // pred_check
          %p279 = pneg %p88
        $region18: #{tpu_custom_call.1} parent=11 // pred_check_branch
          %281 = sbr.rel (%p279) target = $region20
        $region19: #{tpu_custom_call.1} parent=11 // pred_region
          _
        $region20: #{tpu_custom_call.1} parent=11 // pred_fallthru
          _
        // Predicated region
        $region21: #{tpu_custom_call.1} parent=11 // pred_check
          %p282 = pneg %p109
        $region22: #{tpu_custom_call.1} parent=11 // pred_check_branch
          %284 = sbr.rel (%p282) target = $region24
        $region23: #{tpu_custom_call.1} parent=11 // pred_region
          _
        $region24: #{tpu_custom_call.1} parent=11 // pred_fallthru
          _
        // Predicated region
        $region25: #{tpu_custom_call.1} parent=11 // pred_check
          %p285 = pneg %p130
        $region26: #{tpu_custom_call.1} parent=11 // pred_check_branch
          %287 = sbr.rel (%p285) target = $region28
        $region27: #{tpu_custom_call.1} parent=11 // pred_region
          %s289 = ssub.s32 64, 64
          %290 = vsyncadd [#allocation3], %s289
          %s292 = sshll.u32 [#allocation2], 4
          %s293 = int_to_ptr.vmem [resolvable:$true] %s292
          %295 = dma.hbm_to_vmem [thread:$0]  %s4, 64, %s293, [#allocation3]
        $region28: #{tpu_custom_call.1} parent=11 // pred_fallthru
          _
        // Predicated region
        $region29: #{tpu_custom_call.1} parent=11 // pred_check
          %p296 = pneg %p151
        $region30: #{tpu_custom_call.1} parent=11 // pred_check_branch
          %298 = sbr.rel (%p296) target = $region32
        $region31: #{tpu_custom_call.1} parent=11 // pred_region
          _
        $region32: #{tpu_custom_call.1} parent=11 // pred_fallthru
          _
        // Predicated region
        $region33: #{tpu_custom_call.1} parent=11 // pred_check
          %p299 = pneg %p172
        $region34: #{tpu_custom_call.1} parent=11 // pred_check_branch
          %301 = sbr.rel (%p299) target = $region36
        $region35: #{tpu_custom_call.1} parent=11 // pred_region
          _
        $region36: #{tpu_custom_call.1} parent=11 // pred_fallthru
          _
        // Predicated region
        $region37: #{tpu_custom_call.1} parent=11 // pred_check
          %p302 = pneg %p193
        $region38: #{tpu_custom_call.1} parent=11 // pred_check_branch
          %304 = sbr.rel (%p302) target = $region40
        $region39: #{tpu_custom_call.1} parent=11 // pred_region
          _
        $region40: #{tpu_custom_call.1} parent=11 // pred_fallthru
          _
        // Predicated region
        $region41: #{tpu_custom_call.1} parent=11 // pred_check
          %p305 = pneg %p214
        $region42: #{tpu_custom_call.1} parent=11 // pred_check_branch
          %307 = sbr.rel (%p305) target = $region44
        $region43: #{tpu_custom_call.1} parent=11 // pred_region
          _
        $region44: #{tpu_custom_call.1} parent=11 // pred_fallthru
          _
        // Predicated region
        $region45: #{tpu_custom_call.1} parent=11 // pred_check
          %p308 = pneg %p235
        $region46: #{tpu_custom_call.1} parent=11 // pred_check_branch
          %310 = sbr.rel (%p308) target = $region48
        $region47: #{tpu_custom_call.1} parent=11 // pred_region
          _
        $region48: #{tpu_custom_call.1} parent=11 // pred_fallthru
          _
      $region12: #{tpu_custom_call.1} parent=5 // pred_fallthru
        _
      %p311 = scmp.lt.s32.totalorder %s20, 2
      // Predicated region
      $region49: #{tpu_custom_call.1} parent=5 // pred_check
        %p312 = pneg %p311
      $region50: #{tpu_custom_call.1} parent=5 // pred_check_branch
        %314 = sbr.rel (%p312) target = $region52
      $region51: #{tpu_custom_call.1} parent=5 // pred_region
        // Predicated region
        $region53: #{tpu_custom_call.1} parent=51 // pred_check
          %p315 = pneg %p40
        $region54: #{tpu_custom_call.1} parent=51 // pred_check_branch
          %317 = sbr.rel (%p315) target = $region56
        $region55: #{tpu_custom_call.1} parent=51 // pred_region
          %p318 = scmp.lt.s32.totalorder %s20, 1
          %s319 = scalar_select %p318, %s20, 1
          %s320 = smul.addr %s319, 2
          %s321 = smul.addr %s320, 8
          %s322 = scalar_lea.vmem %s0, %s321
        $region56: #{tpu_custom_call.1} parent=51 // pred_fallthru
          _
      $region52: #{tpu_custom_call.1} parent=5 // pred_fallthru
        _
      %p323 = scmp.le.s32.totalorder 1, %s20
      %p324 = scmp.lt.s32.totalorder %s20, 3
      %p325 = pnand %p323, %p324
      %p326 = pneg %p325
      // Predicated region
      $region57: #{tpu_custom_call.1} parent=5 // pred_check
        _
      $region58: #{tpu_custom_call.1} parent=5 // pred_check_branch
        %328 = sbr.rel (%p325) target = $region60
      $region59: #{tpu_custom_call.1} parent=5 // pred_region
        %s329 = ssub.s32 %s20, 1
        // Predicated region
        $region61: #{tpu_custom_call.1} parent=59 // pred_check
          %p330 = pneg %p130
        $region62: #{tpu_custom_call.1} parent=59 // pred_check_branch
          %332 = sbr.rel (%p330) target = $region64
        $region63: #{tpu_custom_call.1} parent=59 // pred_region
          %333 = dma.done [#allocation3], 64
        $region64: #{tpu_custom_call.1} parent=59 // pred_fallthru
          _
        %p334 = scmp.lt.s32.totalorder %s25, 1
        %s335 = scalar_select %p334, %s25, 1
        %s336 = smul.addr %s335, 2
        %s337 = smul.addr %s336, 8
        %s338 = scalar_lea.vmem %s0, %s337
        %p339 = pneg %p46
        %p340 = pneg %p43
        %p341 = pneg %p67
        %p342 = pneg %p64
        %p343 = pneg %p88
        %p344 = pneg %p85
        %p345 = pneg %p109
        %p346 = pneg %p106
        %p347 = pneg %p130
        %p348 = pneg %p127
        %p349 = pneg %p151
        %p350 = pneg %p148
        %p351 = pneg %p172
        %p352 = pneg %p169
        %p353 = pneg %p193
        %p354 = pneg %p190
        %p355 = pneg %p214
        %p356 = pneg %p211
        %p357 = pneg %p235
        %p358 = pneg %p232
        %p359 = pneg %p261
        %p360 = pneg %p258
        %s361 = sand.u32 %s248, 1
        %s362 = scalar_lea.sflag [#allocation4], %s361
        %s363 = sand.u32 %s248, 1
        %s364 = smul.addr %s363, 16
        %s365 = scalar_lea.vmem [#allocation5], %s364
        %p366 = scmp.lt.s32.totalorder %s25, 1
        %s367 = scalar_select %p366, %s25, 1
        %s368 = smul.addr %s367, 2
        %s369 = smul.addr %s368, 8
        %s370 = scalar_lea.vmem %s0, %s369
        %v371 = vld [vmem:[%s370] sm:$0xff]
        %v372 = vld [vmem:[%s370 + $0x8] sm:$0xff]
        %v373 = vld [vmem:[%s1] sm:$0xff]
        %v375 = vrot.slane %v373, 6
        %v376 = vrot.slane %v375, 4
        %v378 = vmul.f32 %v373, %v376
        %v379 = vrot.slane %v373, 7
        %v380 = vrot.slane %v379, 4
        %v382 = vmul.f32 %v373, %v380
        %v383 = vrot.slane %v373, 5
        %v384 = vrot.slane %v383, 4
        %v386 = vmul.f32 %v373, %v384
        %v387 = vld [vmem:[%s2] sm:$0xff]
        %388 = vrot.lane.b32.xlu0 %v371, 17
        %v389 = vpop.permute.xlu0 %388
        %390 = vrot.lane.b32.xlu0 %v372, 17
        %v391 = vpop.permute.xlu0 %390
        %v392 = vlaneseq
        %v393 = vand.u32 %v392, 127
        %vm394 = vcmp.lt.s32.totalorder %v393, 17
        %v395 = vsel %vm394, %v389, %v391
        %v396 = vsel %vm394, %v391, %v389
        %v398 = vlaneseq
        %v399 = vshrl.u32 %v398, 7
        %v400 = vsub.s32 0, %v399
        %v401 = vrot.slane %v378, %v400
        %v402 = vlaneseq
        %v403 = vshrl.u32 %v402, 7
        %v404 = vsub.s32 4, %v403
        %v405 = vrot.slane %v378, %v404
        %v408 = vlaneseq
        %v409 = vshrl.u32 %v408, 7
        %v410 = vsub.s32 0, %v409
        %v411 = vrot.slane %v401, %v410
        %v412 = vlaneseq
        %v413 = vshrl.u32 %v412, 7
        %v414 = vsub.s32 0, %v413
        %v415 = vrot.slane %v405, %v414
        %v416 = vmul.f32 %v396, %v411
        %v417 = vmul.f32 %v395, %v415
        %419 = vset.pattern.permute.xlu0 0
        %420 = vperm.xlu0 %419, %v387
        %v421 = vpop.permute.xlu0 %420
        %v423 = vmul.f32 %v416, %v421
        %v424 = vmul.f32 %v417, %v421
        %v425 = vadd.f32 %v423, 0.0
        %v426 = vadd.f32 %v424, 0.0
        %427 = vrot.lane.b32.xlu0 %v371, 16
        %v428 = vpop.permute.xlu0 %427
        %429 = vrot.lane.b32.xlu0 %v372, 16
        %v430 = vpop.permute.xlu0 %429
        %vm431 = vcmp.lt.s32.totalorder %v393, 16
        %v432 = vsel %vm431, %v428, %v430
        %v433 = vsel %vm431, %v430, %v428
        %v434 = vlaneseq
        %v435 = vshrl.u32 %v434, 7
        %v436 = vsub.s32 0, %v435
        %v437 = vrot.slane %v373, %v436
        %v438 = vlaneseq
        %v439 = vshrl.u32 %v438, 7
        %v440 = vsub.s32 4, %v439
        %v441 = vrot.slane %v373, %v440
        %v444 = vlaneseq
        %v445 = vshrl.u32 %v444, 7
        %v446 = vsub.s32 0, %v445
        %v447 = vrot.slane %v437, %v446
        %v448 = vlaneseq
        %v449 = vshrl.u32 %v448, 7
        %v450 = vsub.s32 0, %v449
        %v451 = vrot.slane %v441, %v450
        %v452 = vmul.f32 %v433, %v447
        %v453 = vmul.f32 %v432, %v451
        %454 = vset.pattern.permute.xlu0 1
        %455 = vperm.xlu0 %454, %v387
        %v456 = vpop.permute.xlu0 %455
        %v458 = vmul.f32 %v452, %v456
        %v459 = vmul.f32 %v453, %v456
        %v460 = vadd.f32 %v425, %v458
        %v461 = vadd.f32 %v426, %v459
        %462 = vrot.lane.b32.xlu0 %v371, 15
        %v463 = vpop.permute.xlu0 %462
        %464 = vrot.lane.b32.xlu0 %v372, 15
        %v465 = vpop.permute.xlu0 %464
        %vm466 = vcmp.lt.s32.totalorder %v393, 15
        %v467 = vsel %vm466, %v463, %v465
        %v468 = vsel %vm466, %v465, %v463
        %v470 = vlaneseq
        %v471 = vshrl.u32 %v470, 7
        %v472 = vsub.s32 0, %v471
        %v473 = vrot.slane %v382, %v472
        %v474 = vlaneseq
        %v475 = vshrl.u32 %v474, 7
        %v476 = vsub.s32 4, %v475
        %v477 = vrot.slane %v382, %v476
        %v480 = vlaneseq
        %v481 = vshrl.u32 %v480, 7
        %v482 = vsub.s32 0, %v481
        %v483 = vrot.slane %v473, %v482
        %v484 = vlaneseq
        %v485 = vshrl.u32 %v484, 7
        %v486 = vsub.s32 0, %v485
        %v487 = vrot.slane %v477, %v486
        %v488 = vmul.f32 %v468, %v483
        %v489 = vmul.f32 %v467, %v487
        %490 = vset.pattern.permute.xlu0 2
        %491 = vperm.xlu0 %490, %v387
        %v492 = vpop.permute.xlu0 %491
        %v494 = vmul.f32 %v488, %v492
        %v495 = vmul.f32 %v489, %v492
        %v496 = vadd.f32 %v460, %v494
        %v497 = vadd.f32 %v461, %v495
        %498 = vrot.lane.b32.xlu0 %v371, 1
        %v499 = vpop.permute.xlu0 %498
        %500 = vrot.lane.b32.xlu0 %v372, 1
        %v501 = vpop.permute.xlu0 %500
        %vm502 = vcmp.lt.s32.totalorder %v393, 1
        %v503 = vsel %vm502, %v499, %v501
        %v504 = vsel %vm502, %v501, %v499
        %v505 = vlaneseq
        %v506 = vshrl.u32 %v505, 7
        %v507 = vsub.s32 2, %v506
        %v508 = vrot.slane %v373, %v507
        %v509 = vlaneseq
        %v510 = vshrl.u32 %v509, 7
        %v511 = vsub.s32 6, %v510
        %v512 = vrot.slane %v373, %v511
        %v515 = vlaneseq
        %v516 = vshrl.u32 %v515, 7
        %v517 = vsub.s32 2, %v516
        %v518 = vrot.slane %v508, %v517
        %v519 = vlaneseq
        %v520 = vshrl.u32 %v519, 7
        %v521 = vsub.s32 2, %v520
        %v522 = vrot.slane %v512, %v521
        %v523 = vmul.f32 %v504, %v518
        %v524 = vmul.f32 %v503, %v522
        %525 = vset.pattern.permute.xlu0 3
        %526 = vperm.xlu0 %525, %v387
        %v527 = vpop.permute.xlu0 %526
        %v529 = vmul.f32 %v523, %v527
        %v530 = vmul.f32 %v524, %v527
        %v531 = vadd.f32 %v496, %v529
        %v532 = vadd.f32 %v497, %v530
        %533 = vset.pattern.permute.xlu0 4
        %534 = vperm.xlu0 %533, %v387
        %v535 = vpop.permute.xlu0 %534
        %v537 = vmul.f32 %v371, %v535
        %v538 = vmul.f32 %v372, %v535
        %v539 = vadd.f32 %v531, %v537
        %v540 = vadd.f32 %v532, %v538
        %541 = vrot.lane.b32.xlu0 %v371, 127
        %v542 = vpop.permute.xlu0 %541
        %543 = vrot.lane.b32.xlu0 %v372, 127
        %v544 = vpop.permute.xlu0 %543
        %vm545 = vcmp.lt.s32.totalorder %v393, 127
        %v546 = vsel %vm545, %v542, %v544
        %v547 = vsel %vm545, %v544, %v542
        %v548 = vlaneseq
        %v549 = vshrl.u32 %v548, 7
        %v550 = vsub.s32 3, %v549
        %v551 = vrot.slane %v373, %v550
        %v552 = vlaneseq
        %v553 = vshrl.u32 %v552, 7
        %v554 = vsub.s32 7, %v553
        %v555 = vrot.slane %v373, %v554
        %v558 = vlaneseq
        %v559 = vshrl.u32 %v558, 7
        %v560 = vsub.s32 3, %v559
        %v561 = vrot.slane %v551, %v560
        %v562 = vlaneseq
        %v563 = vshrl.u32 %v562, 7
        %v564 = vsub.s32 3, %v563
        %v565 = vrot.slane %v555, %v564
        %v566 = vmul.f32 %v546, %v561
        %v567 = vmul.f32 %v547, %v565
        %568 = vset.pattern.permute.xlu0 5
        %569 = vperm.xlu0 %568, %v387
        %v570 = vpop.permute.xlu0 %569
        %v572 = vmul.f32 %v566, %v570
        %v573 = vmul.f32 %v567, %v570
        %v574 = vadd.f32 %v539, %v572
        %v575 = vadd.f32 %v540, %v573
        %576 = vrot.lane.b32.xlu0 %v371, 113
        %v577 = vpop.permute.xlu0 %576
        %578 = vrot.lane.b32.xlu0 %v372, 113
        %v579 = vpop.permute.xlu0 %578
        %vm580 = vcmp.lt.s32.totalorder %v393, 113
        %v581 = vsel %vm580, %v577, %v579
        %v582 = vsel %vm580, %v579, %v577
        %v584 = vlaneseq
        %v585 = vshrl.u32 %v584, 7
        %v586 = vsub.s32 1, %v585
        %v587 = vrot.slane %v386, %v586
        %v588 = vlaneseq
        %v589 = vshrl.u32 %v588, 7
        %v590 = vsub.s32 5, %v589
        %v591 = vrot.slane %v386, %v590
        %v594 = vlaneseq
        %v595 = vshrl.u32 %v594, 7
        %v596 = vsub.s32 1, %v595
        %v597 = vrot.slane %v587, %v596
        %v598 = vlaneseq
        %v599 = vshrl.u32 %v598, 7
        %v600 = vsub.s32 1, %v599
        %v601 = vrot.slane %v591, %v600
        %v602 = vmul.f32 %v581, %v597
        %v603 = vmul.f32 %v582, %v601
        %604 = vset.pattern.permute.xlu0 6
        %605 = vperm.xlu0 %604, %v387
        %v606 = vpop.permute.xlu0 %605
        %v608 = vmul.f32 %v602, %v606
        %v609 = vmul.f32 %v603, %v606
        %v610 = vadd.f32 %v574, %v608
        %v611 = vadd.f32 %v575, %v609
        %612 = vrot.lane.b32.xlu0 %v371, 112
        %v613 = vpop.permute.xlu0 %612
        %614 = vrot.lane.b32.xlu0 %v372, 112
        %v615 = vpop.permute.xlu0 %614
        %vm616 = vcmp.lt.s32.totalorder %v393, 112
        %v617 = vsel %vm616, %v613, %v615
        %v618 = vsel %vm616, %v615, %v613
        %v619 = vlaneseq
        %v620 = vshrl.u32 %v619, 7
        %v621 = vsub.s32 1, %v620
        %v622 = vrot.slane %v373, %v621
        %v623 = vlaneseq
        %v624 = vshrl.u32 %v623, 7
        %v625 = vsub.s32 5, %v624
        %v626 = vrot.slane %v373, %v625
        %v629 = vlaneseq
        %v630 = vshrl.u32 %v629, 7
        %v631 = vsub.s32 1, %v630
        %v632 = vrot.slane %v622, %v631
        %v633 = vlaneseq
        %v634 = vshrl.u32 %v633, 7
        %v635 = vsub.s32 1, %v634
        %v636 = vrot.slane %v626, %v635
        %v637 = vmul.f32 %v617, %v632
        %v638 = vmul.f32 %v618, %v636
        %639 = vset.pattern.permute.xlu0 7
        %640 = vperm.xlu0 %639, %v387
        %v641 = vpop.permute.xlu0 %640
        %v643 = vmul.f32 %v637, %v641
        %v644 = vmul.f32 %v638, %v641
        %v645 = vadd.f32 %v610, %v643
        %v646 = vadd.f32 %v611, %v644
        %647 = vrot.lane.b32.xlu0 %v371, 111
        %v648 = vpop.permute.xlu0 %647
        %649 = vrot.lane.b32.xlu0 %v372, 111
        %v650 = vpop.permute.xlu0 %649
        %vm651 = vcmp.lt.s32.totalorder %v393, 111
        %v652 = vsel %vm651, %v648, %v650
        %v653 = vsel %vm651, %v650, %v648
        %v654 = vlaneseq
        %v655 = vshrl.u32 %v654, 7
        %v656 = vsub.s32 1, %v655
        %v657 = vrot.slane %v378, %v656
        %v658 = vlaneseq
        %v659 = vshrl.u32 %v658, 7
        %v660 = vsub.s32 5, %v659
        %v661 = vrot.slane %v378, %v660
        %v664 = vlaneseq
        %v665 = vshrl.u32 %v664, 7
        %v666 = vsub.s32 1, %v665
        %v667 = vrot.slane %v657, %v666
        %v668 = vlaneseq
        %v669 = vshrl.u32 %v668, 7
        %v670 = vsub.s32 1, %v669
        %v671 = vrot.slane %v661, %v670
        %v672 = vmul.f32 %v652, %v667
        %v673 = vmul.f32 %v653, %v671
        %674 = vset.pattern.permute.xlu0 8
        %675 = vperm.xlu0 %674, %v387
        %v676 = vpop.permute.xlu0 %675
        %v678 = vmul.f32 %v672, %v676
        %v679 = vmul.f32 %v673, %v676
        %v680 = vadd.f32 %v645, %v678
        %v681 = vadd.f32 %v646, %v679
        %v682 = vld [vmem:[%s3] sm:$0xff]
        %684 = vset.pattern.permute.xlu0 0
        %685 = vperm.xlu0 %684, %v682
        %v686 = vpop.permute.xlu0 %685
        %v688 = vadd.f32 %v680, %v686
        %v689 = vadd.f32 %v681, %v686
        %v690 = vmax.f32 %v688, 0.0
        %v691 = vmax.f32 %v689, 0.0
        %v692 = vld [vmem:[#allocation2] sm:$0xf]
        %694 = vset.pattern.permute.xlu0 0
        %695 = vperm.xlu0 %694, %v692
        %v696 = vpop.permute.xlu0 %695
        %v698 = vlaneseq
        %v699 = vshrl.u32 %v698, 7
        %v700 = vsub.s32 0, %v699
        %v701 = vrot.slane %v690, %v700
        %v702 = vlaneseq
        %v703 = vshrl.u32 %v702, 7
        %v704 = vsub.s32 0, %v703
        %v705 = vrot.slane %v691, %v704
        %v706 = vmul.f32 %v696, %v701
        %v707 = vmul.f32 %v696, %v705
        %v708 = vadd.f32 %v706, 0.0
        %v709 = vadd.f32 %v707, 0.0
        %710 = vset.pattern.permute.xlu0 1
        %711 = vperm.xlu0 %710, %v692
        %v712 = vpop.permute.xlu0 %711
        %v714 = vlaneseq
        %v715 = vshrl.u32 %v714, 7
        %v716 = vsub.s32 1, %v715
        %v717 = vrot.slane %v690, %v716
        %v718 = vlaneseq
        %v719 = vshrl.u32 %v718, 7
        %v720 = vsub.s32 1, %v719
        %v721 = vrot.slane %v691, %v720
        %v722 = vmul.f32 %v712, %v717
        %v723 = vmul.f32 %v712, %v721
        %v724 = vadd.f32 %v708, %v722
        %v725 = vadd.f32 %v709, %v723
        %726 = vset.pattern.permute.xlu0 2
        %727 = vperm.xlu0 %726, %v692
        %v728 = vpop.permute.xlu0 %727
        %v730 = vlaneseq
        %v731 = vshrl.u32 %v730, 7
        %v732 = vsub.s32 2, %v731
        %v733 = vrot.slane %v690, %v732
        %v734 = vlaneseq
        %v735 = vshrl.u32 %v734, 7
        %v736 = vsub.s32 2, %v735
        %v737 = vrot.slane %v691, %v736
        %v738 = vmul.f32 %v728, %v733
        %v739 = vmul.f32 %v728, %v737
        %v740 = vadd.f32 %v724, %v738
        %v741 = vadd.f32 %v725, %v739
        %742 = vset.pattern.permute.xlu0 3
        %743 = vperm.xlu0 %742, %v692
        %v744 = vpop.permute.xlu0 %743
        %v746 = vlaneseq
        %v747 = vshrl.u32 %v746, 7
        %v748 = vsub.s32 3, %v747
        %v749 = vrot.slane %v690, %v748
        %v750 = vlaneseq
        %v751 = vshrl.u32 %v750, 7
        %v752 = vsub.s32 3, %v751
        %v753 = vrot.slane %v691, %v752
        %v754 = vmul.f32 %v744, %v749
        %v755 = vmul.f32 %v744, %v753
        %v756 = vadd.f32 %v740, %v754
        %v757 = vadd.f32 %v741, %v755
        %758 = vset.pattern.permute.xlu0 4
        %759 = vperm.xlu0 %758, %v692
        %v760 = vpop.permute.xlu0 %759
        %v762 = vlaneseq
        %v763 = vshrl.u32 %v762, 7
        %v764 = vsub.s32 4, %v763
        %v765 = vrot.slane %v690, %v764
        %v766 = vlaneseq
        %v767 = vshrl.u32 %v766, 7
        %v768 = vsub.s32 4, %v767
        %v769 = vrot.slane %v691, %v768
        %v770 = vmul.f32 %v760, %v765
        %v771 = vmul.f32 %v760, %v769
        %v772 = vadd.f32 %v756, %v770
        %v773 = vadd.f32 %v757, %v771
        %774 = vset.pattern.permute.xlu0 5
        %775 = vperm.xlu0 %774, %v692
        %v776 = vpop.permute.xlu0 %775
        %v778 = vlaneseq
        %v779 = vshrl.u32 %v778, 7
        %v780 = vsub.s32 5, %v779
        %v781 = vrot.slane %v690, %v780
        %v782 = vlaneseq
        %v783 = vshrl.u32 %v782, 7
        %v784 = vsub.s32 5, %v783
        %v785 = vrot.slane %v691, %v784
        %v786 = vmul.f32 %v776, %v781
        %v787 = vmul.f32 %v776, %v785
        %v788 = vadd.f32 %v772, %v786
        %v789 = vadd.f32 %v773, %v787
        %790 = vset.pattern.permute.xlu0 6
        %791 = vperm.xlu0 %790, %v692
        %v792 = vpop.permute.xlu0 %791
        %v794 = vlaneseq
        %v795 = vshrl.u32 %v794, 7
        %v796 = vsub.s32 6, %v795
        %v797 = vrot.slane %v690, %v796
        %v798 = vlaneseq
        %v799 = vshrl.u32 %v798, 7
        %v800 = vsub.s32 6, %v799
        %v801 = vrot.slane %v691, %v800
        %v802 = vmul.f32 %v792, %v797
        %v803 = vmul.f32 %v792, %v801
        %v804 = vadd.f32 %v788, %v802
        %v805 = vadd.f32 %v789, %v803
        %806 = vset.pattern.permute.xlu0 7
        %807 = vperm.xlu0 %806, %v692
        %v808 = vpop.permute.xlu0 %807
        %v810 = vlaneseq
        %v811 = vshrl.u32 %v810, 7
        %v812 = vsub.s32 7, %v811
        %v813 = vrot.slane %v690, %v812
        %v814 = vlaneseq
        %v815 = vshrl.u32 %v814, 7
        %v816 = vsub.s32 7, %v815
        %v817 = vrot.slane %v691, %v816
        %v818 = vmul.f32 %v808, %v813
        %v819 = vmul.f32 %v808, %v817
        %v820 = vadd.f32 %v804, %v818
        %v821 = vadd.f32 %v805, %v819
        %v822 = vld [vmem:[%s5] sm:$0xf]
        %824 = vset.pattern.permute.xlu0 0
        %825 = vperm.xlu0 %824, %v822
        %v826 = vpop.permute.xlu0 %825
        %v828 = vadd.f32 %v820, %v826
        %v829 = vadd.f32 %v821, %v826
        %v830 = vld [vmem:[%s6] sm:$0xff]
        %832 = vset.pattern.permute.xlu0 0
        %833 = vperm.xlu0 %832, %v830
        %v834 = vpop.permute.xlu0 %833
        %v836 = vlaneseq
        %v837 = vshrl.u32 %v836, 7
        %v838 = vsub.s32 0, %v837
        %v839 = vrot.slane %v828, %v838
        %v840 = vlaneseq
        %v841 = vshrl.u32 %v840, 7
        %v842 = vsub.s32 0, %v841
        %v843 = vrot.slane %v829, %v842
        %v844 = vmul.f32 %v834, %v839
        %v845 = vmul.f32 %v834, %v843
        %v846 = vadd.f32 %v844, 0.0
        %v847 = vadd.f32 %v845, 0.0
        %848 = vset.pattern.permute.xlu0 1
        %849 = vperm.xlu0 %848, %v830
        %v850 = vpop.permute.xlu0 %849
        %v852 = vlaneseq
        %v853 = vshrl.u32 %v852, 7
        %v854 = vsub.s32 1, %v853
        %v855 = vrot.slane %v828, %v854
        %v856 = vlaneseq
        %v857 = vshrl.u32 %v856, 7
        %v858 = vsub.s32 1, %v857
        %v859 = vrot.slane %v829, %v858
        %v860 = vmul.f32 %v850, %v855
        %v861 = vmul.f32 %v850, %v859
        %v862 = vadd.f32 %v846, %v860
        %v863 = vadd.f32 %v847, %v861
        %864 = vset.pattern.permute.xlu0 2
        %865 = vperm.xlu0 %864, %v830
        %v866 = vpop.permute.xlu0 %865
        %v868 = vlaneseq
        %v869 = vshrl.u32 %v868, 7
        %v870 = vsub.s32 2, %v869
        %v871 = vrot.slane %v828, %v870
        %v872 = vlaneseq
        %v873 = vshrl.u32 %v872, 7
        %v874 = vsub.s32 2, %v873
        %v875 = vrot.slane %v829, %v874
        %v876 = vmul.f32 %v866, %v871
        %v877 = vmul.f32 %v866, %v875
        %v878 = vadd.f32 %v862, %v876
        %v879 = vadd.f32 %v863, %v877
        %880 = vset.pattern.permute.xlu0 3
        %881 = vperm.xlu0 %880, %v830
        %v882 = vpop.permute.xlu0 %881
        %v884 = vlaneseq
        %v885 = vshrl.u32 %v884, 7
        %v886 = vsub.s32 3, %v885
        %v887 = vrot.slane %v828, %v886
        %v888 = vlaneseq
        %v889 = vshrl.u32 %v888, 7
        %v890 = vsub.s32 3, %v889
        %v891 = vrot.slane %v829, %v890
        %v892 = vmul.f32 %v882, %v887
        %v893 = vmul.f32 %v882, %v891
        %v894 = vadd.f32 %v878, %v892
        %v895 = vadd.f32 %v879, %v893
        %v896 = vld [vmem:[%s7] sm:$0xff]
        %898 = vset.pattern.permute.xlu0 0
        %899 = vperm.xlu0 %898, %v896
        %v900 = vpop.permute.xlu0 %899
        %v902 = vadd.f32 %v894, %v900
        %v903 = vadd.f32 %v895, %v900
        %v904 = vmax.f32 %v902, 0.0
        %v905 = vmax.f32 %v903, 0.0
        %v906 = vld [vmem:[%s8] sm:$0xff]
        %907 = vrot.lane.b32.xlu0 %v904, 17
        %v908 = vpop.permute.xlu0 %907
        %909 = vrot.lane.b32.xlu0 %v905, 17
        %v910 = vpop.permute.xlu0 %909
        %v911 = vsel %vm394, %v908, %v910
        %v912 = vsel %vm394, %v910, %v908
        %v913 = vmul.f32 %v912, %v411
        %v914 = vmul.f32 %v911, %v415
        %916 = vset.pattern.permute.xlu0 0
        %917 = vperm.xlu0 %916, %v906
        %v918 = vpop.permute.xlu0 %917
        %v920 = vmul.f32 %v913, %v918
        %v921 = vmul.f32 %v914, %v918
        %v922 = vadd.f32 %v920, 0.0
        %v923 = vadd.f32 %v921, 0.0
        %924 = vrot.lane.b32.xlu0 %v904, 16
        %v925 = vpop.permute.xlu0 %924
        %926 = vrot.lane.b32.xlu0 %v905, 16
        %v927 = vpop.permute.xlu0 %926
        %v928 = vsel %vm431, %v925, %v927
        %v929 = vsel %vm431, %v927, %v925
        %v930 = vmul.f32 %v929, %v447
        %v931 = vmul.f32 %v928, %v451
        %932 = vset.pattern.permute.xlu0 1
        %933 = vperm.xlu0 %932, %v906
        %v934 = vpop.permute.xlu0 %933
        %v936 = vmul.f32 %v930, %v934
        %v937 = vmul.f32 %v931, %v934
        %v938 = vadd.f32 %v922, %v936
        %v939 = vadd.f32 %v923, %v937
        %940 = vrot.lane.b32.xlu0 %v904, 15
        %v941 = vpop.permute.xlu0 %940
        %942 = vrot.lane.b32.xlu0 %v905, 15
        %v943 = vpop.permute.xlu0 %942
        %v944 = vsel %vm466, %v941, %v943
        %v945 = vsel %vm466, %v943, %v941
        %v946 = vmul.f32 %v945, %v483
        %v947 = vmul.f32 %v944, %v487
        %948 = vset.pattern.permute.xlu0 2
        %949 = vperm.xlu0 %948, %v906
        %v950 = vpop.permute.xlu0 %949
        %v952 = vmul.f32 %v946, %v950
        %v953 = vmul.f32 %v947, %v950
        %v954 = vadd.f32 %v938, %v952
        %v955 = vadd.f32 %v939, %v953
        %956 = vrot.lane.b32.xlu0 %v904, 1
        %v957 = vpop.permute.xlu0 %956
        %958 = vrot.lane.b32.xlu0 %v905, 1
        %v959 = vpop.permute.xlu0 %958
        %v960 = vsel %vm502, %v957, %v959
        %v961 = vsel %vm502, %v959, %v957
        %v962 = vmul.f32 %v961, %v518
        %v963 = vmul.f32 %v960, %v522
        %964 = vset.pattern.permute.xlu0 3
        %965 = vperm.xlu0 %964, %v906
        %v966 = vpop.permute.xlu0 %965
        %v968 = vmul.f32 %v962, %v966
        %v969 = vmul.f32 %v963, %v966
        %v970 = vadd.f32 %v954, %v968
        %v971 = vadd.f32 %v955, %v969
        %972 = vset.pattern.permute.xlu0 4
        %973 = vperm.xlu0 %972, %v906
        %v974 = vpop.permute.xlu0 %973
        %v976 = vmul.f32 %v904, %v974
        %v977 = vmul.f32 %v905, %v974
        %v978 = vadd.f32 %v970, %v976
        %v979 = vadd.f32 %v971, %v977
        %980 = vrot.lane.b32.xlu0 %v904, 127
        %v981 = vpop.permute.xlu0 %980
        %982 = vrot.lane.b32.xlu0 %v905, 127
        %v983 = vpop.permute.xlu0 %982
        %v984 = vsel %vm545, %v981, %v983
        %v985 = vsel %vm545, %v983, %v981
        %v986 = vmul.f32 %v984, %v561
        %v987 = vmul.f32 %v985, %v565
        %988 = vset.pattern.permute.xlu0 5
        %989 = vperm.xlu0 %988, %v906
        %v990 = vpop.permute.xlu0 %989
        %v992 = vmul.f32 %v986, %v990
        %v993 = vmul.f32 %v987, %v990
        %v994 = vadd.f32 %v978, %v992
        %v995 = vadd.f32 %v979, %v993
        %996 = vrot.lane.b32.xlu0 %v904, 113
        %v997 = vpop.permute.xlu0 %996
        %998 = vrot.lane.b32.xlu0 %v905, 113
        %v999 = vpop.permute.xlu0 %998
        %v1000 = vsel %vm580, %v997, %v999
        %v1001 = vsel %vm580, %v999, %v997
        %v1002 = vmul.f32 %v1000, %v597
        %v1003 = vmul.f32 %v1001, %v601
        %1004 = vset.pattern.permute.xlu0 6
        %1005 = vperm.xlu0 %1004, %v906
        %v1006 = vpop.permute.xlu0 %1005
        %v1008 = vmul.f32 %v1002, %v1006
        %v1009 = vmul.f32 %v1003, %v1006
        %v1010 = vadd.f32 %v994, %v1008
        %v1011 = vadd.f32 %v995, %v1009
        %1012 = vrot.lane.b32.xlu0 %v904, 112
        %v1013 = vpop.permute.xlu0 %1012
        %1014 = vrot.lane.b32.xlu0 %v905, 112
        %v1015 = vpop.permute.xlu0 %1014
        %v1016 = vsel %vm616, %v1013, %v1015
        %v1017 = vsel %vm616, %v1015, %v1013
        %v1018 = vmul.f32 %v1016, %v632
        %v1019 = vmul.f32 %v1017, %v636
        %1020 = vset.pattern.permute.xlu0 7
        %1021 = vperm.xlu0 %1020, %v906
        %v1022 = vpop.permute.xlu0 %1021
        %v1024 = vmul.f32 %v1018, %v1022
        %v1025 = vmul.f32 %v1019, %v1022
        %v1026 = vadd.f32 %v1010, %v1024
        %v1027 = vadd.f32 %v1011, %v1025
        %1028 = vrot.lane.b32.xlu0 %v904, 111
        %v1029 = vpop.permute.xlu0 %1028
        %1030 = vrot.lane.b32.xlu0 %v905, 111
        %v1031 = vpop.permute.xlu0 %1030
        %v1032 = vsel %vm651, %v1029, %v1031
        %v1033 = vsel %vm651, %v1031, %v1029
        %v1034 = vmul.f32 %v1032, %v667
        %v1035 = vmul.f32 %v1033, %v671
        %1036 = vset.pattern.permute.xlu0 8
        %1037 = vperm.xlu0 %1036, %v906
        %v1038 = vpop.permute.xlu0 %1037
        %v1040 = vmul.f32 %v1034, %v1038
        %v1041 = vmul.f32 %v1035, %v1038
        %v1042 = vadd.f32 %v1026, %v1040
        %v1043 = vadd.f32 %v1027, %v1041
        %v1044 = vld [vmem:[%s9] sm:$0xff]
        %1046 = vset.pattern.permute.xlu0 0
        %1047 = vperm.xlu0 %1046, %v1044
        %v1048 = vpop.permute.xlu0 %1047
        %v1050 = vadd.f32 %v1042, %v1048
        %v1051 = vadd.f32 %v1043, %v1048
        %v1052 = vadd.f32 %v1050, %v371
        %v1053 = vadd.f32 %v1051, %v372
        %1054 = vst [vmem:[%s365] sm:$0xff] %v1052
        %1055 = vst [vmem:[%s365 + $0x8] sm:$0xff] %v1053
        %s1056 = sand.u32 %s248, 1
        %s1057 = scalar_lea.sflag [#allocation4], %s1056
        %s1058 = sand.u32 %s248, 1
        %s1059 = smul.addr %s1058, 16
        %s1060 = scalar_lea.vmem [#allocation5], %s1059
        // Predicated region
        $region65: #{tpu_custom_call.1} parent=59 // pred_check
          %p1061 = pneg %p258
        $region66: #{tpu_custom_call.1} parent=59 // pred_check_branch
          %1063 = sbr.rel (%p1061) target = $region68
        $region67: #{tpu_custom_call.1} parent=59 // pred_region
          %s1065 = ssub.s32 256, 256
          %1066 = vsyncadd %s1057, %s1065
          %s1067 = smul.addr %s25, 2
          %s1068 = smul.addr %s1067, 128
          %s1069 = scalar_lea.hbm %s10, %s1068
          %s1071 = sshll.u32 %s1060, 4
          %s1072 = int_to_ptr.vmem [resolvable:$true] %s1071
          %1074 = dma.vmem_to_hbm [thread:$0]  %s1072, 256, %s1069, %s1057
        $region68: #{tpu_custom_call.1} parent=59 // pred_fallthru
          _
      $region60: #{tpu_custom_call.1} parent=5 // pred_fallthru
        _
      %p1075 = scmp.le.s32.totalorder 2, %s20
      // Predicated region
      $region69: #{tpu_custom_call.1} parent=5 // pred_check
        %p1076 = pneg %p1075
      $region70: #{tpu_custom_call.1} parent=5 // pred_check_branch
        %1078 = sbr.rel (%p1076) target = $region72
      $region71: #{tpu_custom_call.1} parent=5 // pred_region
        %s1079 = ssub.s32 %s20, 2
        // Predicated region
        $region73: #{tpu_custom_call.1} parent=71 // pred_check
          %p1080 = pneg %p264
        $region74: #{tpu_custom_call.1} parent=71 // pred_check_branch
          %1082 = sbr.rel (%p1080) target = $region76
        $region75: #{tpu_custom_call.1} parent=71 // pred_region
          %s1083 = sand.u32 %s249, 1
          %s1084 = scalar_lea.sflag [#allocation4], %s1083
          %s1085 = sand.u32 %s249, 1
          %s1086 = smul.addr %s1085, 16
          %s1087 = scalar_lea.vmem [#allocation5], %s1086
          %1088 = dma.done %s1084, 256
        $region76: #{tpu_custom_call.1} parent=71 // pred_fallthru
          _
      $region72: #{tpu_custom_call.1} parent=5 // pred_fallthru
        _
    $region6: #{tpu_custom_call.1} parent=1 // loop_footer
      %s24 = sadd.s32 1, %s20
    $region7: #{tpu_custom_call.1} parent=1 // loop_footer_branch
      %19 = sbr.rel target = $region3
    $region8: #{tpu_custom_call.1} parent=1 // loop_exit
      _
    %1089 = vsyncpa [#allocation3], 1
    %s1090 = scalar_lea.sflag [#allocation3], 1
    %1091 = vsyncpa %s1090, 1
    %1092 = vsyncpa [#allocation4], 1
    %s1093 = scalar_lea.sflag [#allocation4], 1
    %1094 = vsyncpa %s1093, 1

</llo_original>
